<compile_context>
chip_gen: v7x
topology: tpu7x:2x2x1
jax: 0.10.0
libtpu: 0.0.40
codegen_flags: <defaults>
</compile_context>

<pallas_src>
import functools

import jax
import jax.numpy as jnp
from jax.experimental import pallas as pl
from jax.experimental.pallas import tpu as pltpu


# --------------------------------------------------------------------------- #
# Fused Pallas kernel: all TemporalBlocks + head for b_tile batch elements
# --------------------------------------------------------------------------- #
def _tcn_fused_kernel(*refs, block_meta, b_tile, seq_len, c_last, out_size):
    """refs layout (positional):
      [0]                  x_ref  : (b_tile*L, Cin) f32  time-major, batch packed into rows
      per block (in order) w1, b1, w2, b2 [, wd, bd]
                           w1 : (K, Cin, Cout) bf16   b1 : (1, Cout) f32
                           w2 : (K, Cout, Cout) bf16  b2 : (1, Cout) f32
                           wd : (Cin, Cout) bf16      bd : (1, Cout) f32   (only Cin != Cout)
      [-3], [-2]           w_head : (3, C_last, out) bf16   b_head : (1, out) f32
      [-1]                 o_ref  : (b_tile, 1, out) f32
    """
    o_ref = refs[-1]
    x_ref = refs[0]
    L = seq_len
    M = b_tile * L

    # Hoisted once: time index within each packed batch element; reused by every tap of
    # every conv/block (broadcast along lanes happens inside jnp.where).
    t_in_seq = jax.lax.broadcasted_iota(jnp.int32, (M, 1), 0) % L

    y = x_ref[...].astype(jnp.float32)                          # (M, Cin)

    def causal_conv(inp, inp_bf, w_ref, b_ref, ksize, dilation):
        # Per-tap accumulated matmuls: acc += shifted_masked_k @ w[k]  (f32 accumulator,
        # bf16 operands).  Shifts that fall entirely before the sequence start are skipped.
        acc = None
        for k in range(ksize):
            s = (ksize - 1 - k) * dilation
            if s >= L:
                continue                                        # fully-masked tap
            if s == 0:
                xk_bf = inp_bf
            else:
                shifted = pltpu.roll(inp, shift=s, axis=0)      # sublane shift (XLU slot)
                xk_bf = jnp.where(t_in_seq >= s, shifted, 0.0).astype(jnp.bfloat16)
            d = jnp.dot(xk_bf, w_ref[k], preferred_element_type=jnp.float32)
            acc = d if acc is None else acc + d
        return acc + b_ref[...]

    idx = 1
    for blk in block_meta:
        w1, b1, w2, b2 = refs[idx], refs[idx + 1], refs[idx + 2], refs[idx + 3]
        idx += 4
        y_bf = y.astype(jnp.bfloat16)
        if blk["has_downsample"]:
            wd, bd = refs[idx], refs[idx + 1]
            idx += 2
            res = jnp.dot(y_bf, wd[...], preferred_element_type=jnp.float32) + bd[...]
        else:
            res = y                                             # identity residual
        h1 = jnp.maximum(causal_conv(y, y_bf, w1, b1, blk["ksize"], blk["dilation"]), 0.0)
        h1_bf = h1.astype(jnp.bfloat16)
        h2 = jnp.maximum(causal_conv(h1, h1_bf, w2, b2, blk["ksize"], blk["dilation"]), 0.0)
        y = jnp.maximum(h2 + res, 0.0)

    w_head, b_head = refs[idx], refs[idx + 1]

    # Head epilogue: three tiny matmuls (weights pre-scaled host-side), no lane concat.
    y3 = y.reshape(b_tile, L, c_last)                           # L multiple of 8 -> cheap
    z = jnp.zeros((b_tile, out_size), jnp.float32) + b_head[...]
    for j in range(3):
        xj = y3[:, L - 1 - j, :].astype(jnp.bfloat16)           # (b_tile, c_last)
        z = z + jnp.dot(xj, w_head[j], preferred_element_type=jnp.float32)

    m = jnp.max(z, axis=1, keepdims=True)
    e = jnp.exp(z - m)
    lse = jnp.log(jnp.sum(e, axis=1, keepdims=True)) + m
    o_ref[...] = (z - lse)[:, None, :].astype(o_ref.dtype)


# --------------------------------------------------------------------------- #
# Wrapper
# --------------------------------------------------------------------------- #
def _pick_b_tile(N, L, target_rows=256):
    """Largest divisor of N keeping >=2 grid steps (v7x dual-TC) with b_tile*L <= ~256 rows."""
    best = 1
    for bt in range(1, N + 1):
        if N % bt:
            continue
        if N >= 2 and N // bt < 2:
            continue
        if bt * L <= max(target_rows, L):
            best = max(best, bt)
    return best


def tcn_forward(params, inputs_ncl, *, b_tile=None):
    """inputs_ncl: (N, C_in, L) — PyTorch layout. Returns (N, output_size) log-probs."""
    N, c_in, L = inputs_ncl.shape
    if b_tile is None:
        b_tile = _pick_b_tile(N, L)
    assert N % b_tile == 0, "batch must be divisible by b_tile"
    assert L % 8 == 0 and L >= 3

    # (N, C, L) -> (N, L, C) -> (N*L, C): channels on lanes, batch*time packed into rows.
    x2d = jnp.transpose(inputs_ncl, (0, 2, 1)).astype(jnp.float32).reshape(N * L, c_in)

    def full_spec(arr):
        nd = arr.ndim
        return pl.BlockSpec(arr.shape, lambda i, _nd=nd: (0,) * _nd)

    in_arrays = [x2d]
    in_specs = [pl.BlockSpec((b_tile * L, c_in), lambda i: (i, 0))]

    block_meta = []
    for lp in params["blocks"]:
        K, cin, cout = lp["w1"].shape
        arrs = [lp["w1"].astype(jnp.bfloat16), lp["b1"],
                lp["w2"].astype(jnp.bfloat16), lp["b2"]]
        has_ds = "wd" in lp
        if has_ds:
            arrs += [lp["wd"].astype(jnp.bfloat16), lp["bd"]]
        for a in arrs:
            in_arrays.append(a)
            in_specs.append(full_spec(a))
        block_meta.append(dict(ksize=K, dilation=lp["dilation"], has_downsample=has_ds))

    # Fold the /2, /4 head scalings into a (3, C_last, out) bf16 stack + one combined bias.
    c_last = params["lw1"].shape[0]
    w_head = jnp.stack([params["lw1"], 0.5 * params["lw2"], 0.25 * params["lw3"]],
                       axis=0).astype(jnp.bfloat16)
    b_head = (params["lb1"] + 0.5 * params["lb2"] + 0.25 * params["lb3"]).astype(jnp.float32)
    for a in (w_head, b_head):
        in_arrays.append(a)
        in_specs.append(full_spec(a))

    out_size = w_head.shape[-1]
    kernel = functools.partial(_tcn_fused_kernel, block_meta=tuple(block_meta),
                               b_tile=b_tile, seq_len=L, c_last=c_last, out_size=out_size)
    out = pl.pallas_call(
        kernel,
        out_shape=jax.ShapeDtypeStruct((N, 1, out_size), jnp.float32),
        grid=(N // b_tile,),
        in_specs=in_specs,
        out_specs=pl.BlockSpec((b_tile, 1, out_size), lambda i: (i, 0, 0)),
        compiler_params=pltpu.CompilerParams(dimension_semantics=("parallel",)),
    )(*in_arrays)
    return out[:, 0, :]


# --------------------------------------------------------------------------- #
# Parameter init (deterministic, synthetic)
# --------------------------------------------------------------------------- #
def init_params(key, input_size, output_size, num_channels, kernel_size):
    params = {"blocks": []}
    n_keys = 4 * len(num_channels) + 6
    keys = iter(jax.random.split(key, n_keys))

    in_ch = input_size
    for i, out_ch in enumerate(num_channels):
        dilation = 2 ** i
        blk = dict(
            w1=0.1 * jax.random.normal(next(keys), (kernel_size, in_ch, out_ch), jnp.float32),
            b1=0.1 * jax.random.normal(next(keys), (1, out_ch), jnp.float32),
            w2=0.1 * jax.random.normal(next(keys), (kernel_size, out_ch, out_ch), jnp.float32),
            b2=0.1 * jax.random.normal(next(keys), (1, out_ch), jnp.float32),
            dilation=dilation, ksize=kernel_size)
        if in_ch != out_ch:                       # 1x1 conv downsample
            blk["wd"] = 0.1 * jax.random.normal(jax.random.fold_in(key, 1000 + i),
                                                (in_ch, out_ch), jnp.float32)
            blk["bd"] = 0.1 * jax.random.normal(jax.random.fold_in(key, 2000 + i),
                                                (1, out_ch), jnp.float32)
        # identity residual (in_ch == out_ch): handled statically in the kernel (no wd/bd)
        params["blocks"].append(blk)
        in_ch = out_ch

    c_last = num_channels[-1]
    params["lw1"] = 0.1 * jax.random.normal(next(keys), (c_last, output_size), jnp.float32)
    params["lb1"] = 0.1 * jax.random.normal(next(keys), (1, output_size), jnp.float32)
    params["lw2"] = 0.1 * jax.random.normal(next(keys), (c_last, output_size), jnp.float32)
    params["lb2"] = 0.1 * jax.random.normal(next(keys), (1, output_size), jnp.float32)
    params["lw3"] = 0.1 * jax.random.normal(next(keys), (c_last, output_size), jnp.float32)
    params["lb3"] = 0.1 * jax.random.normal(next(keys), (1, output_size), jnp.float32)
    return params


# --------------------------------------------------------------------------- #
# Pure-JAX reference (f32, for correctness check)
# --------------------------------------------------------------------------- #
def ref_forward(params, inputs_ncl):
    x = jnp.transpose(inputs_ncl, (0, 2, 1)).astype(jnp.float32)
    for lp in params["blocks"]:
        d, K = lp["dilation"], lp["ksize"]
        L = x.shape[1]

        def cconv(inp, w, b):
            pad = (K - 1) * d
            xp = jnp.pad(inp, ((0, 0), (pad, 0), (0, 0)))
            out = jnp.zeros(inp.shape[:2] + (w.shape[2],), jnp.float32) + b
            for k in range(K):
                out = out + jnp.einsum("nlc,co->nlo", xp[:, k * d:k * d + L, :], w[k])
            return out

        h1 = jax.nn.relu(cconv(x, lp["w1"], lp["b1"]))
        h2 = jax.nn.relu(cconv(h1, lp["w2"], lp["b2"]))
        if "wd" in lp:
            res = jnp.einsum("nlc,co->nlo", x, lp["wd"]) + lp["bd"]
        else:
            res = x
        x = jax.nn.relu(h2 + res)

    z = ((x[:, -1, :] @ params["lw1"] + params["lb1"])
         + (x[:, -2, :] @ params["lw2"] + params["lb2"]) / 2.0
         + (x[:, -3, :] @ params["lw3"] + params["lb3"]) / 4.0)
    return jax.nn.log_softmax(z, axis=1)


# --------------------------------------------------------------------------- #
if __name__ == "__main__":
    # Small shapes consistent with the module: (N, C_in, L_in)
    N, C_in, L = 2, 4, 16
    output_size = 8
    num_channels = [32, 32]
    kernel_size = 3
    dropout = 0.2  # identity in eval mode

    key = jax.random.PRNGKey(0)
    k_in, k_par = jax.random.split(key)
    inputs = jax.random.normal(k_in, (N, C_in, L), jnp.float32)
    params = init_params(k_par, C_in, output_size, num_channels, kernel_size)

    out = jax.block_until_ready(tcn_forward(params, inputs))
    ref = jax.block_until_ready(ref_forward(params, inputs))

    assert out.shape == (N, output_size)
    # bf16 MXU operands (f32 accumulation) vs the f32 reference -> slightly looser tolerance.
    assert bool(jnp.allclose(out, ref, rtol=5e-2, atol=5e-2)), "mismatch vs reference"

    print("KERNEL_OK")
</pallas_src>

<mosaic_0001>
module attributes {stable_mosaic.version = 11 : i64} {
  func.func @_tcn_fused_kernel(%arg0: i32, %arg1: memref<16x4xf32, #tpu.memory_space<vmem>>, %arg2: memref<3x4x32xbf16, #tpu.memory_space<vmem>>, %arg3: memref<1x32xf32, #tpu.memory_space<vmem>>, %arg4: memref<3x32x32xbf16, #tpu.memory_space<vmem>>, %arg5: memref<1x32xf32, #tpu.memory_space<vmem>>, %arg6: memref<4x32xbf16, #tpu.memory_space<vmem>>, %arg7: memref<1x32xf32, #tpu.memory_space<vmem>>, %arg8: memref<3x32x32xbf16, #tpu.memory_space<vmem>>, %arg9: memref<1x32xf32, #tpu.memory_space<vmem>>, %arg10: memref<3x32x32xbf16, #tpu.memory_space<vmem>>, %arg11: memref<1x32xf32, #tpu.memory_space<vmem>>, %arg12: memref<3x32x8xbf16, #tpu.memory_space<vmem>>, %arg13: memref<1x8xf32, #tpu.memory_space<vmem>>, %arg14: memref<1x1x8xf32, #tpu.memory_space<vmem>>) attributes {dimension_semantics = [#tpu.dimension_semantics<parallel>], iteration_bounds = array<i64: 2>, scalar_prefetch = 0 : i64, scratch_operands = 0 : i64, tpu.core_type = #tpu.core_type<tc>, window_params = [{transform_indices = @transform_0, window_bounds = array<i64: 16, 4>}, {pipeline_mode = #tpu.pipeline_mode<synchronous>, transform_indices = @transform_1, window_bounds = array<i64: 3, 4, 32>}, {pipeline_mode = #tpu.pipeline_mode<synchronous>, transform_indices = @transform_2, window_bounds = array<i64: 1, 32>}, {pipeline_mode = #tpu.pipeline_mode<synchronous>, transform_indices = @transform_3, window_bounds = array<i64: 3, 32, 32>}, {pipeline_mode = #tpu.pipeline_mode<synchronous>, transform_indices = @transform_4, window_bounds = array<i64: 1, 32>}, {pipeline_mode = #tpu.pipeline_mode<synchronous>, transform_indices = @transform_5, window_bounds = array<i64: 4, 32>}, {pipeline_mode = #tpu.pipeline_mode<synchronous>, transform_indices = @transform_6, window_bounds = array<i64: 1, 32>}, {pipeline_mode = #tpu.pipeline_mode<synchronous>, transform_indices = @transform_7, window_bounds = array<i64: 3, 32, 32>}, {pipeline_mode = #tpu.pipeline_mode<synchronous>, transform_indices = @transform_8, window_bounds = array<i64: 1, 32>}, {pipeline_mode = #tpu.pipeline_mode<synchronous>, transform_indices = @transform_9, window_bounds = array<i64: 3, 32, 32>}, {pipeline_mode = #tpu.pipeline_mode<synchronous>, transform_indices = @transform_10, window_bounds = array<i64: 1, 32>}, {pipeline_mode = #tpu.pipeline_mode<synchronous>, transform_indices = @transform_11, window_bounds = array<i64: 3, 32, 8>}, {pipeline_mode = #tpu.pipeline_mode<synchronous>, transform_indices = @transform_12, window_bounds = array<i64: 1, 8>}, {transform_indices = @transform_13, window_bounds = array<i64: 1, 1, 8>}]} {
    %0 = tpu.iota {dimensions = array<i32: 0>} : vector<16x1xi32>
    %c16_i32 = arith.constant 16 : i32
    %c0_i32 = arith.constant 0 : i32
    %1 = arith.cmpi eq, %c16_i32, %c0_i32 : i32
    %c1_i32 = arith.constant 1 : i32
    %2 = arith.select %1, %c1_i32, %c16_i32 : i32
    %3 = vector.broadcast %2 : i32 to vector<16x1xi32>
    %4 = arith.remsi %0, %3 : vector<16x1xi32>
    %c0_i32_0 = arith.constant 0 : i32
    %5 = vector.broadcast %c0_i32_0 : i32 to vector<16x1xi32>
    %6 = arith.cmpi ne, %4, %5 : vector<16x1xi32>
    %c0_i32_1 = arith.constant 0 : i32
    %7 = vector.broadcast %c0_i32_1 : i32 to vector<16x1xi32>
    %8 = arith.cmpi slt, %4, %7 : vector<16x1xi32>
    %c0_i32_2 = arith.constant 0 : i32
    %9 = arith.cmpi slt, %2, %c0_i32_2 : i32
    %10 = vector.broadcast %9 : i1 to vector<16x1xi1>
    %11 = vector.broadcast %10 : vector<16x1xi1> to vector<16x1xi1>
    %12 = arith.xori %8, %11 : vector<16x1xi1>
    %13 = arith.andi %12, %6 : vector<16x1xi1>
    %14 = vector.broadcast %2 : i32 to vector<16x1xi32>
    %15 = arith.addi %4, %14 : vector<16x1xi32>
    %16 = arith.select %13, %15, %4 : vector<16x1xi1>, vector<16x1xi32>
    %c0 = arith.constant 0 : index
    %c0_3 = arith.constant 0 : index
    %17 = vector.load %arg1[%c0, %c0_3] : memref<16x4xf32, #tpu.memory_space<vmem>>, vector<16x4xf32>
    %18 = arith.truncf %17 : vector<16x4xf32> to vector<16x4xbf16>
    %c0_4 = arith.constant 0 : index
    %c0_5 = arith.constant 0 : index
    %19 = vector.load %arg6[%c0_4, %c0_5] : memref<4x32xbf16, #tpu.memory_space<vmem>>, vector<4x32xbf16>
    %cst = arith.constant dense<0.000000e+00> : vector<16x32xf32>
    %20 = tpu.matmul %18, %19, %cst {dimension_numbers = #tpu.dot_dimension_numbers<[1], [0], [0], [1], [0, 0, 1, 1], [], []>} : vector<16x4xbf16>, vector<4x32xbf16>, vector<16x32xf32> -> vector<16x32xf32>
    %c0_6 = arith.constant 0 : index
    %c0_7 = arith.constant 0 : index
    %21 = vector.load %arg7[%c0_6, %c0_7] : memref<1x32xf32, #tpu.memory_space<vmem>>, vector<1x32xf32>
    %22 = vector.broadcast %21 : vector<1x32xf32> to vector<16x32xf32>
    %23 = arith.addf %20, %22 : vector<16x32xf32>
    %c2_i32 = arith.constant 2 : i32
    %24 = tpu.dynamic_rotate %17 by %c2_i32 dim 0 : vector<16x4xf32>, i32 -> vector<16x4xf32>
    %c2_i32_8 = arith.constant 2 : i32
    %25 = vector.broadcast %c2_i32_8 : i32 to vector<16x1xi32>
    %26 = arith.cmpi sge, %16, %25 : vector<16x1xi32>
    %cst_9 = arith.constant 0.000000e+00 : f32
    %27 = vector.shape_cast %26 : vector<16x1xi1> to vector<16x1xi1>
    %28 = vector.broadcast %27 : vector<16x1xi1> to vector<16x4xi1>
    %29 = vector.broadcast %cst_9 : f32 to vector<16x4xf32>
    %30 = arith.select %28, %24, %29 : vector<16x4xi1>, vector<16x4xf32>
    %31 = arith.truncf %30 : vector<16x4xf32> to vector<16x4xbf16>
    %c0_10 = arith.constant 0 : index
    %c0_11 = arith.constant 0 : index
    %c0_12 = arith.constant 0 : index
    %32 = vector.load %arg2[%c0_10, %c0_11, %c0_12] : memref<3x4x32xbf16, #tpu.memory_space<vmem>>, vector<1x4x32xbf16>
    %33 = vector.shape_cast %32 : vector<1x4x32xbf16> to vector<4x32xbf16>
    %cst_13 = arith.constant dense<0.000000e+00> : vector<16x32xf32>
    %34 = tpu.matmul %31, %33, %cst_13 {dimension_numbers = #tpu.dot_dimension_numbers<[1], [0], [0], [1], [0, 0, 1, 1], [], []>} : vector<16x4xbf16>, vector<4x32xbf16>, vector<16x32xf32> -> vector<16x32xf32>
    %c1_i32_14 = arith.constant 1 : i32
    %35 = tpu.dynamic_rotate %17 by %c1_i32_14 dim 0 : vector<16x4xf32>, i32 -> vector<16x4xf32>
    %c1_i32_15 = arith.constant 1 : i32
    %36 = vector.broadcast %c1_i32_15 : i32 to vector<16x1xi32>
    %37 = arith.cmpi sge, %16, %36 : vector<16x1xi32>
    %cst_16 = arith.constant 0.000000e+00 : f32
    %38 = vector.shape_cast %37 : vector<16x1xi1> to vector<16x1xi1>
    %39 = vector.broadcast %38 : vector<16x1xi1> to vector<16x4xi1>
    %40 = vector.broadcast %cst_16 : f32 to vector<16x4xf32>
    %41 = arith.select %39, %35, %40 : vector<16x4xi1>, vector<16x4xf32>
    %42 = arith.truncf %41 : vector<16x4xf32> to vector<16x4xbf16>
    %c1 = arith.constant 1 : index
    %c0_17 = arith.constant 0 : index
    %c0_18 = arith.constant 0 : index
    %43 = vector.load %arg2[%c1, %c0_17, %c0_18] : memref<3x4x32xbf16, #tpu.memory_space<vmem>>, vector<1x4x32xbf16>
    %44 = vector.shape_cast %43 : vector<1x4x32xbf16> to vector<4x32xbf16>
    %cst_19 = arith.constant dense<0.000000e+00> : vector<16x32xf32>
    %45 = tpu.matmul %42, %44, %cst_19 {dimension_numbers = #tpu.dot_dimension_numbers<[1], [0], [0], [1], [0, 0, 1, 1], [], []>} : vector<16x4xbf16>, vector<4x32xbf16>, vector<16x32xf32> -> vector<16x32xf32>
    %46 = arith.addf %34, %45 : vector<16x32xf32>
    %c2 = arith.constant 2 : index
    %c0_20 = arith.constant 0 : index
    %c0_21 = arith.constant 0 : index
    %47 = vector.load %arg2[%c2, %c0_20, %c0_21] : memref<3x4x32xbf16, #tpu.memory_space<vmem>>, vector<1x4x32xbf16>
    %48 = vector.shape_cast %47 : vector<1x4x32xbf16> to vector<4x32xbf16>
    %cst_22 = arith.constant dense<0.000000e+00> : vector<16x32xf32>
    %49 = tpu.matmul %18, %48, %cst_22 {dimension_numbers = #tpu.dot_dimension_numbers<[1], [0], [0], [1], [0, 0, 1, 1], [], []>} : vector<16x4xbf16>, vector<4x32xbf16>, vector<16x32xf32> -> vector<16x32xf32>
    %50 = arith.addf %46, %49 : vector<16x32xf32>
    %c0_23 = arith.constant 0 : index
    %c0_24 = arith.constant 0 : index
    %51 = vector.load %arg3[%c0_23, %c0_24] : memref<1x32xf32, #tpu.memory_space<vmem>>, vector<1x32xf32>
    %52 = vector.broadcast %51 : vector<1x32xf32> to vector<16x32xf32>
    %53 = arith.addf %50, %52 : vector<16x32xf32>
    %cst_25 = arith.constant 0.000000e+00 : f32
    %54 = vector.broadcast %cst_25 : f32 to vector<16x32xf32>
    %55 = arith.maximumf %53, %54 : vector<16x32xf32>
    %56 = arith.truncf %55 : vector<16x32xf32> to vector<16x32xbf16>
    %c2_i32_26 = arith.constant 2 : i32
    %57 = tpu.dynamic_rotate %55 by %c2_i32_26 dim 0 : vector<16x32xf32>, i32 -> vector<16x32xf32>
    %c2_i32_27 = arith.constant 2 : i32
    %58 = vector.broadcast %c2_i32_27 : i32 to vector<16x1xi32>
    %59 = arith.cmpi sge, %16, %58 : vector<16x1xi32>
    %cst_28 = arith.constant 0.000000e+00 : f32
    %60 = vector.shape_cast %59 : vector<16x1xi1> to vector<16x1xi1>
    %61 = vector.broadcast %60 : vector<16x1xi1> to vector<16x32xi1>
    %62 = vector.broadcast %cst_28 : f32 to vector<16x32xf32>
    %63 = arith.select %61, %57, %62 : vector<16x32xi1>, vector<16x32xf32>
    %64 = arith.truncf %63 : vector<16x32xf32> to vector<16x32xbf16>
    %c0_29 = arith.constant 0 : index
    %c0_30 = arith.constant 0 : index
    %c0_31 = arith.constant 0 : index
    %65 = vector.load %arg4[%c0_29, %c0_30, %c0_31] : memref<3x32x32xbf16, #tpu.memory_space<vmem>>, vector<1x32x32xbf16>
    %66 = vector.shape_cast %65 : vector<1x32x32xbf16> to vector<32x32xbf16>
    %cst_32 = arith.constant dense<0.000000e+00> : vector<16x32xf32>
    %67 = tpu.matmul %64, %66, %cst_32 {dimension_numbers = #tpu.dot_dimension_numbers<[1], [0], [0], [1], [0, 0, 1, 1], [], []>} : vector<16x32xbf16>, vector<32x32xbf16>, vector<16x32xf32> -> vector<16x32xf32>
    %c1_i32_33 = arith.constant 1 : i32
    %68 = tpu.dynamic_rotate %55 by %c1_i32_33 dim 0 : vector<16x32xf32>, i32 -> vector<16x32xf32>
    %c1_i32_34 = arith.constant 1 : i32
    %69 = vector.broadcast %c1_i32_34 : i32 to vector<16x1xi32>
    %70 = arith.cmpi sge, %16, %69 : vector<16x1xi32>
    %cst_35 = arith.constant 0.000000e+00 : f32
    %71 = vector.shape_cast %70 : vector<16x1xi1> to vector<16x1xi1>
    %72 = vector.broadcast %71 : vector<16x1xi1> to vector<16x32xi1>
    %73 = vector.broadcast %cst_35 : f32 to vector<16x32xf32>
    %74 = arith.select %72, %68, %73 : vector<16x32xi1>, vector<16x32xf32>
    %75 = arith.truncf %74 : vector<16x32xf32> to vector<16x32xbf16>
    %c1_36 = arith.constant 1 : index
    %c0_37 = arith.constant 0 : index
    %c0_38 = arith.constant 0 : index
    %76 = vector.load %arg4[%c1_36, %c0_37, %c0_38] : memref<3x32x32xbf16, #tpu.memory_space<vmem>>, vector<1x32x32xbf16>
    %77 = vector.shape_cast %76 : vector<1x32x32xbf16> to vector<32x32xbf16>
    %cst_39 = arith.constant dense<0.000000e+00> : vector<16x32xf32>
    %78 = tpu.matmul %75, %77, %cst_39 {dimension_numbers = #tpu.dot_dimension_numbers<[1], [0], [0], [1], [0, 0, 1, 1], [], []>} : vector<16x32xbf16>, vector<32x32xbf16>, vector<16x32xf32> -> vector<16x32xf32>
    %79 = arith.addf %67, %78 : vector<16x32xf32>
    %c2_40 = arith.constant 2 : index
    %c0_41 = arith.constant 0 : index
    %c0_42 = arith.constant 0 : index
    %80 = vector.load %arg4[%c2_40, %c0_41, %c0_42] : memref<3x32x32xbf16, #tpu.memory_space<vmem>>, vector<1x32x32xbf16>
    %81 = vector.shape_cast %80 : vector<1x32x32xbf16> to vector<32x32xbf16>
    %cst_43 = arith.constant dense<0.000000e+00> : vector<16x32xf32>
    %82 = tpu.matmul %56, %81, %cst_43 {dimension_numbers = #tpu.dot_dimension_numbers<[1], [0], [0], [1], [0, 0, 1, 1], [], []>} : vector<16x32xbf16>, vector<32x32xbf16>, vector<16x32xf32> -> vector<16x32xf32>
    %83 = arith.addf %79, %82 : vector<16x32xf32>
    %c0_44 = arith.constant 0 : index
    %c0_45 = arith.constant 0 : index
    %84 = vector.load %arg5[%c0_44, %c0_45] : memref<1x32xf32, #tpu.memory_space<vmem>>, vector<1x32xf32>
    %85 = vector.broadcast %84 : vector<1x32xf32> to vector<16x32xf32>
    %86 = arith.addf %83, %85 : vector<16x32xf32>
    %cst_46 = arith.constant 0.000000e+00 : f32
    %87 = vector.broadcast %cst_46 : f32 to vector<16x32xf32>
    %88 = arith.maximumf %86, %87 : vector<16x32xf32>
    %89 = arith.addf %88, %23 : vector<16x32xf32>
    %cst_47 = arith.constant 0.000000e+00 : f32
    %90 = vector.broadcast %cst_47 : f32 to vector<16x32xf32>
    %91 = arith.maximumf %89, %90 : vector<16x32xf32>
    %92 = arith.truncf %91 : vector<16x32xf32> to vector<16x32xbf16>
    %c4_i32 = arith.constant 4 : i32
    %93 = tpu.dynamic_rotate %91 by %c4_i32 dim 0 : vector<16x32xf32>, i32 -> vector<16x32xf32>
    %c4_i32_48 = arith.constant 4 : i32
    %94 = vector.broadcast %c4_i32_48 : i32 to vector<16x1xi32>
    %95 = arith.cmpi sge, %16, %94 : vector<16x1xi32>
    %cst_49 = arith.constant 0.000000e+00 : f32
    %96 = vector.shape_cast %95 : vector<16x1xi1> to vector<16x1xi1>
    %97 = vector.broadcast %96 : vector<16x1xi1> to vector<16x32xi1>
    %98 = vector.broadcast %cst_49 : f32 to vector<16x32xf32>
    %99 = arith.select %97, %93, %98 : vector<16x32xi1>, vector<16x32xf32>
    %100 = arith.truncf %99 : vector<16x32xf32> to vector<16x32xbf16>
    %c0_50 = arith.constant 0 : index
    %c0_51 = arith.constant 0 : index
    %c0_52 = arith.constant 0 : index
    %101 = vector.load %arg8[%c0_50, %c0_51, %c0_52] : memref<3x32x32xbf16, #tpu.memory_space<vmem>>, vector<1x32x32xbf16>
    %102 = vector.shape_cast %101 : vector<1x32x32xbf16> to vector<32x32xbf16>
    %cst_53 = arith.constant dense<0.000000e+00> : vector<16x32xf32>
    %103 = tpu.matmul %100, %102, %cst_53 {dimension_numbers = #tpu.dot_dimension_numbers<[1], [0], [0], [1], [0, 0, 1, 1], [], []>} : vector<16x32xbf16>, vector<32x32xbf16>, vector<16x32xf32> -> vector<16x32xf32>
    %c2_i32_54 = arith.constant 2 : i32
    %104 = tpu.dynamic_rotate %91 by %c2_i32_54 dim 0 : vector<16x32xf32>, i32 -> vector<16x32xf32>
    %c2_i32_55 = arith.constant 2 : i32
    %105 = vector.broadcast %c2_i32_55 : i32 to vector<16x1xi32>
    %106 = arith.cmpi sge, %16, %105 : vector<16x1xi32>
    %cst_56 = arith.constant 0.000000e+00 : f32
    %107 = vector.shape_cast %106 : vector<16x1xi1> to vector<16x1xi1>
    %108 = vector.broadcast %107 : vector<16x1xi1> to vector<16x32xi1>
    %109 = vector.broadcast %cst_56 : f32 to vector<16x32xf32>
    %110 = arith.select %108, %104, %109 : vector<16x32xi1>, vector<16x32xf32>
    %111 = arith.truncf %110 : vector<16x32xf32> to vector<16x32xbf16>
    %c1_57 = arith.constant 1 : index
    %c0_58 = arith.constant 0 : index
    %c0_59 = arith.constant 0 : index
    %112 = vector.load %arg8[%c1_57, %c0_58, %c0_59] : memref<3x32x32xbf16, #tpu.memory_space<vmem>>, vector<1x32x32xbf16>
    %113 = vector.shape_cast %112 : vector<1x32x32xbf16> to vector<32x32xbf16>
    %cst_60 = arith.constant dense<0.000000e+00> : vector<16x32xf32>
    %114 = tpu.matmul %111, %113, %cst_60 {dimension_numbers = #tpu.dot_dimension_numbers<[1], [0], [0], [1], [0, 0, 1, 1], [], []>} : vector<16x32xbf16>, vector<32x32xbf16>, vector<16x32xf32> -> vector<16x32xf32>
    %115 = arith.addf %103, %114 : vector<16x32xf32>
    %c2_61 = arith.constant 2 : index
    %c0_62 = arith.constant 0 : index
    %c0_63 = arith.constant 0 : index
    %116 = vector.load %arg8[%c2_61, %c0_62, %c0_63] : memref<3x32x32xbf16, #tpu.memory_space<vmem>>, vector<1x32x32xbf16>
    %117 = vector.shape_cast %116 : vector<1x32x32xbf16> to vector<32x32xbf16>
    %cst_64 = arith.constant dense<0.000000e+00> : vector<16x32xf32>
    %118 = tpu.matmul %92, %117, %cst_64 {dimension_numbers = #tpu.dot_dimension_numbers<[1], [0], [0], [1], [0, 0, 1, 1], [], []>} : vector<16x32xbf16>, vector<32x32xbf16>, vector<16x32xf32> -> vector<16x32xf32>
    %119 = arith.addf %115, %118 : vector<16x32xf32>
    %c0_65 = arith.constant 0 : index
    %c0_66 = arith.constant 0 : index
    %120 = vector.load %arg9[%c0_65, %c0_66] : memref<1x32xf32, #tpu.memory_space<vmem>>, vector<1x32xf32>
    %121 = vector.broadcast %120 : vector<1x32xf32> to vector<16x32xf32>
    %122 = arith.addf %119, %121 : vector<16x32xf32>
    %cst_67 = arith.constant 0.000000e+00 : f32
    %123 = vector.broadcast %cst_67 : f32 to vector<16x32xf32>
    %124 = arith.maximumf %122, %123 : vector<16x32xf32>
    %125 = arith.truncf %124 : vector<16x32xf32> to vector<16x32xbf16>
    %c4_i32_68 = arith.constant 4 : i32
    %126 = tpu.dynamic_rotate %124 by %c4_i32_68 dim 0 : vector<16x32xf32>, i32 -> vector<16x32xf32>
    %c4_i32_69 = arith.constant 4 : i32
    %127 = vector.broadcast %c4_i32_69 : i32 to vector<16x1xi32>
    %128 = arith.cmpi sge, %16, %127 : vector<16x1xi32>
    %cst_70 = arith.constant 0.000000e+00 : f32
    %129 = vector.shape_cast %128 : vector<16x1xi1> to vector<16x1xi1>
    %130 = vector.broadcast %129 : vector<16x1xi1> to vector<16x32xi1>
    %131 = vector.broadcast %cst_70 : f32 to vector<16x32xf32>
    %132 = arith.select %130, %126, %131 : vector<16x32xi1>, vector<16x32xf32>
    %133 = arith.truncf %132 : vector<16x32xf32> to vector<16x32xbf16>
    %c0_71 = arith.constant 0 : index
    %c0_72 = arith.constant 0 : index
    %c0_73 = arith.constant 0 : index
    %134 = vector.load %arg10[%c0_71, %c0_72, %c0_73] : memref<3x32x32xbf16, #tpu.memory_space<vmem>>, vector<1x32x32xbf16>
    %135 = vector.shape_cast %134 : vector<1x32x32xbf16> to vector<32x32xbf16>
    %cst_74 = arith.constant dense<0.000000e+00> : vector<16x32xf32>
    %136 = tpu.matmul %133, %135, %cst_74 {dimension_numbers = #tpu.dot_dimension_numbers<[1], [0], [0], [1], [0, 0, 1, 1], [], []>} : vector<16x32xbf16>, vector<32x32xbf16>, vector<16x32xf32> -> vector<16x32xf32>
    %c2_i32_75 = arith.constant 2 : i32
    %137 = tpu.dynamic_rotate %124 by %c2_i32_75 dim 0 : vector<16x32xf32>, i32 -> vector<16x32xf32>
    %c2_i32_76 = arith.constant 2 : i32
    %138 = vector.broadcast %c2_i32_76 : i32 to vector<16x1xi32>
    %139 = arith.cmpi sge, %16, %138 : vector<16x1xi32>
    %cst_77 = arith.constant 0.000000e+00 : f32
    %140 = vector.shape_cast %139 : vector<16x1xi1> to vector<16x1xi1>
    %141 = vector.broadcast %140 : vector<16x1xi1> to vector<16x32xi1>
    %142 = vector.broadcast %cst_77 : f32 to vector<16x32xf32>
    %143 = arith.select %141, %137, %142 : vector<16x32xi1>, vector<16x32xf32>
    %144 = arith.truncf %143 : vector<16x32xf32> to vector<16x32xbf16>
    %c1_78 = arith.constant 1 : index
    %c0_79 = arith.constant 0 : index
    %c0_80 = arith.constant 0 : index
    %145 = vector.load %arg10[%c1_78, %c0_79, %c0_80] : memref<3x32x32xbf16, #tpu.memory_space<vmem>>, vector<1x32x32xbf16>
    %146 = vector.shape_cast %145 : vector<1x32x32xbf16> to vector<32x32xbf16>
    %cst_81 = arith.constant dense<0.000000e+00> : vector<16x32xf32>
    %147 = tpu.matmul %144, %146, %cst_81 {dimension_numbers = #tpu.dot_dimension_numbers<[1], [0], [0], [1], [0, 0, 1, 1], [], []>} : vector<16x32xbf16>, vector<32x32xbf16>, vector<16x32xf32> -> vector<16x32xf32>
    %148 = arith.addf %136, %147 : vector<16x32xf32>
    %c2_82 = arith.constant 2 : index
    %c0_83 = arith.constant 0 : index
    %c0_84 = arith.constant 0 : index
    %149 = vector.load %arg10[%c2_82, %c0_83, %c0_84] : memref<3x32x32xbf16, #tpu.memory_space<vmem>>, vector<1x32x32xbf16>
    %150 = vector.shape_cast %149 : vector<1x32x32xbf16> to vector<32x32xbf16>
    %cst_85 = arith.constant dense<0.000000e+00> : vector<16x32xf32>
    %151 = tpu.matmul %125, %150, %cst_85 {dimension_numbers = #tpu.dot_dimension_numbers<[1], [0], [0], [1], [0, 0, 1, 1], [], []>} : vector<16x32xbf16>, vector<32x32xbf16>, vector<16x32xf32> -> vector<16x32xf32>
    %152 = arith.addf %148, %151 : vector<16x32xf32>
    %c0_86 = arith.constant 0 : index
    %c0_87 = arith.constant 0 : index
    %153 = vector.load %arg11[%c0_86, %c0_87] : memref<1x32xf32, #tpu.memory_space<vmem>>, vector<1x32xf32>
    %154 = vector.broadcast %153 : vector<1x32xf32> to vector<16x32xf32>
    %155 = arith.addf %152, %154 : vector<16x32xf32>
    %cst_88 = arith.constant 0.000000e+00 : f32
    %156 = vector.broadcast %cst_88 : f32 to vector<16x32xf32>
    %157 = arith.maximumf %155, %156 : vector<16x32xf32>
    %158 = arith.addf %157, %91 : vector<16x32xf32>
    %cst_89 = arith.constant 0.000000e+00 : f32
    %159 = vector.broadcast %cst_89 : f32 to vector<16x32xf32>
    %160 = arith.maximumf %158, %159 : vector<16x32xf32>
    %161 = vector.shape_cast %160 : vector<16x32xf32> to vector<1x16x32xf32>
    %cst_90 = arith.constant 0.000000e+00 : f32
    %162 = vector.broadcast %cst_90 : f32 to vector<1x8xf32>
    %c0_91 = arith.constant 0 : index
    %c0_92 = arith.constant 0 : index
    %163 = vector.load %arg13[%c0_91, %c0_92] : memref<1x8xf32, #tpu.memory_space<vmem>>, vector<1x8xf32>
    %164 = arith.addf %162, %163 : vector<1x8xf32>
    %165 = vector.extract_strided_slice %161 {offsets = [0, 15, 0], sizes = [1, 1, 32], strides = [1, 1, 1]} : vector<1x16x32xf32> to vector<1x1x32xf32>
    %166 = vector.shape_cast %165 : vector<1x1x32xf32> to vector<1x32xf32>
    %167 = arith.truncf %166 : vector<1x32xf32> to vector<1x32xbf16>
    %c0_93 = arith.constant 0 : index
    %c0_94 = arith.constant 0 : index
    %c0_95 = arith.constant 0 : index
    %168 = vector.load %arg12[%c0_93, %c0_94, %c0_95] : memref<3x32x8xbf16, #tpu.memory_space<vmem>>, vector<1x32x8xbf16>
    %169 = vector.shape_cast %168 : vector<1x32x8xbf16> to vector<32x8xbf16>
    %cst_96 = arith.constant dense<0.000000e+00> : vector<1x8xf32>
    %170 = tpu.matmul %167, %169, %cst_96 {dimension_numbers = #tpu.dot_dimension_numbers<[1], [0], [0], [1], [0, 0, 1, 1], [], []>} : vector<1x32xbf16>, vector<32x8xbf16>, vector<1x8xf32> -> vector<1x8xf32>
    %171 = arith.addf %164, %170 : vector<1x8xf32>
    %172 = vector.extract_strided_slice %161 {offsets = [0, 14, 0], sizes = [1, 1, 32], strides = [1, 1, 1]} : vector<1x16x32xf32> to vector<1x1x32xf32>
    %173 = vector.shape_cast %172 : vector<1x1x32xf32> to vector<1x32xf32>
    %174 = arith.truncf %173 : vector<1x32xf32> to vector<1x32xbf16>
    %c1_97 = arith.constant 1 : index
    %c0_98 = arith.constant 0 : index
    %c0_99 = arith.constant 0 : index
    %175 = vector.load %arg12[%c1_97, %c0_98, %c0_99] : memref<3x32x8xbf16, #tpu.memory_space<vmem>>, vector<1x32x8xbf16>
    %176 = vector.shape_cast %175 : vector<1x32x8xbf16> to vector<32x8xbf16>
    %cst_100 = arith.constant dense<0.000000e+00> : vector<1x8xf32>
    %177 = tpu.matmul %174, %176, %cst_100 {dimension_numbers = #tpu.dot_dimension_numbers<[1], [0], [0], [1], [0, 0, 1, 1], [], []>} : vector<1x32xbf16>, vector<32x8xbf16>, vector<1x8xf32> -> vector<1x8xf32>
    %178 = arith.addf %171, %177 : vector<1x8xf32>
    %179 = vector.extract_strided_slice %161 {offsets = [0, 13, 0], sizes = [1, 1, 32], strides = [1, 1, 1]} : vector<1x16x32xf32> to vector<1x1x32xf32>
    %180 = vector.shape_cast %179 : vector<1x1x32xf32> to vector<1x32xf32>
    %181 = arith.truncf %180 : vector<1x32xf32> to vector<1x32xbf16>
    %c2_101 = arith.constant 2 : index
    %c0_102 = arith.constant 0 : index
    %c0_103 = arith.constant 0 : index
    %182 = vector.load %arg12[%c2_101, %c0_102, %c0_103] : memref<3x32x8xbf16, #tpu.memory_space<vmem>>, vector<1x32x8xbf16>
    %183 = vector.shape_cast %182 : vector<1x32x8xbf16> to vector<32x8xbf16>
    %cst_104 = arith.constant dense<0.000000e+00> : vector<1x8xf32>
    %184 = tpu.matmul %181, %183, %cst_104 {dimension_numbers = #tpu.dot_dimension_numbers<[1], [0], [0], [1], [0, 0, 1, 1], [], []>} : vector<1x32xbf16>, vector<32x8xbf16>, vector<1x8xf32> -> vector<1x8xf32>
    %185 = arith.addf %178, %184 : vector<1x8xf32>
    %cst_105 = arith.constant dense<0xFF800000> : vector<1xf32>
    %186 = vector.multi_reduction <maximumf>, %185, %cst_105 [1] : vector<1x8xf32> to vector<1xf32>
    %187 = vector.shape_cast %186 : vector<1xf32> to vector<1x1xf32>
    %188 = vector.broadcast %187 : vector<1x1xf32> to vector<1x8xf32>
    %189 = arith.subf %185, %188 : vector<1x8xf32>
    %190 = math.exp %189 : vector<1x8xf32>
    %cst_106 = arith.constant dense<0.000000e+00> : vector<1xf32>
    %191 = vector.multi_reduction <add>, %190, %cst_106 [1] : vector<1x8xf32> to vector<1xf32>
    %192 = vector.shape_cast %191 : vector<1xf32> to vector<1x1xf32>
    %193 = math.log %192 : vector<1x1xf32>
    %194 = arith.addf %193, %187 : vector<1x1xf32>
    %195 = vector.broadcast %194 : vector<1x1xf32> to vector<1x8xf32>
    %196 = arith.subf %185, %195 : vector<1x8xf32>
    %197 = vector.shape_cast %196 : vector<1x8xf32> to vector<1x1x8xf32>
    %c0_107 = arith.constant 0 : index
    %c0_108 = arith.constant 0 : index
    %c0_109 = arith.constant 0 : index
    %198 = vector.load %arg14[%c0_107, %c0_108, %c0_109] : memref<1x1x8xf32, #tpu.memory_space<vmem>>, vector<1x1x8xf32>
    tpu.vector_store %arg14[%c0_107, %c0_108, %c0_109], %197 {strides = array<i32>} : memref<1x1x8xf32, #tpu.memory_space<vmem>>, vector<1x1x8xf32>,
    return
  }
  func.func @transform_0(%arg0: i32) -> (i32, i32) {
    %c0_i32 = arith.constant 0 : i32
    %c0_i32_0 = arith.constant 0 : i32
    return %arg0, %c0_i32 : i32, i32
  }
  func.func @transform_1(%arg0: i32) -> (i32, i32, i32) {
    %c0_i32 = arith.constant 0 : i32
    %c0_i32_0 = arith.constant 0 : i32
    %c0_i32_1 = arith.constant 0 : i32
    %c0_i32_2 = arith.constant 0 : i32
    return %c0_i32, %c0_i32_0, %c0_i32_1 : i32, i32, i32
  }
  func.func @transform_2(%arg0: i32) -> (i32, i32) {
    %c0_i32 = arith.constant 0 : i32
    %c0_i32_0 = arith.constant 0 : i32
    %c0_i32_1 = arith.constant 0 : i32
    return %c0_i32, %c0_i32_0 : i32, i32
  }
  func.func @transform_3(%arg0: i32) -> (i32, i32, i32) {
    %c0_i32 = arith.constant 0 : i32
    %c0_i32_0 = arith.constant 0 : i32
    %c0_i32_1 = arith.constant 0 : i32
    %c0_i32_2 = arith.constant 0 : i32
    return %c0_i32, %c0_i32_0, %c0_i32_1 : i32, i32, i32
  }
  func.func @transform_4(%arg0: i32) -> (i32, i32) {
    %c0_i32 = arith.constant 0 : i32
    %c0_i32_0 = arith.constant 0 : i32
    %c0_i32_1 = arith.constant 0 : i32
    return %c0_i32, %c0_i32_0 : i32, i32
  }
  func.func @transform_5(%arg0: i32) -> (i32, i32) {
    %c0_i32 = arith.constant 0 : i32
    %c0_i32_0 = arith.constant 0 : i32
    %c0_i32_1 = arith.constant 0 : i32
    return %c0_i32, %c0_i32_0 : i32, i32
  }
  func.func @transform_6(%arg0: i32) -> (i32, i32) {
    %c0_i32 = arith.constant 0 : i32
    %c0_i32_0 = arith.constant 0 : i32
    %c0_i32_1 = arith.constant 0 : i32
    return %c0_i32, %c0_i32_0 : i32, i32
  }
  func.func @transform_7(%arg0: i32) -> (i32, i32, i32) {
    %c0_i32 = arith.constant 0 : i32
    %c0_i32_0 = arith.constant 0 : i32
    %c0_i32_1 = arith.constant 0 : i32
    %c0_i32_2 = arith.constant 0 : i32
    return %c0_i32, %c0_i32_0, %c0_i32_1 : i32, i32, i32
  }
  func.func @transform_8(%arg0: i32) -> (i32, i32) {
    %c0_i32 = arith.constant 0 : i32
    %c0_i32_0 = arith.constant 0 : i32
    %c0_i32_1 = arith.constant 0 : i32
    return %c0_i32, %c0_i32_0 : i32, i32
  }
  func.func @transform_9(%arg0: i32) -> (i32, i32, i32) {
    %c0_i32 = arith.constant 0 : i32
    %c0_i32_0 = arith.constant 0 : i32
    %c0_i32_1 = arith.constant 0 : i32
    %c0_i32_2 = arith.constant 0 : i32
    return %c0_i32, %c0_i32_0, %c0_i32_1 : i32, i32, i32
  }
  func.func @transform_10(%arg0: i32) -> (i32, i32) {
    %c0_i32 = arith.constant 0 : i32
    %c0_i32_0 = arith.constant 0 : i32
    %c0_i32_1 = arith.constant 0 : i32
    return %c0_i32, %c0_i32_0 : i32, i32
  }
  func.func @transform_11(%arg0: i32) -> (i32, i32, i32) {
    %c0_i32 = arith.constant 0 : i32
    %c0_i32_0 = arith.constant 0 : i32
    %c0_i32_1 = arith.constant 0 : i32
    %c0_i32_2 = arith.constant 0 : i32
    return %c0_i32, %c0_i32_0, %c0_i32_1 : i32, i32, i32
  }
  func.func @transform_12(%arg0: i32) -> (i32, i32) {
    %c0_i32 = arith.constant 0 : i32
    %c0_i32_0 = arith.constant 0 : i32
    %c0_i32_1 = arith.constant 0 : i32
    return %c0_i32, %c0_i32_0 : i32, i32
  }
  func.func @transform_13(%arg0: i32) -> (i32, i32, i32) {
    %c0_i32 = arith.constant 0 : i32
    %c0_i32_0 = arith.constant 0 : i32
    %c0_i32_1 = arith.constant 0 : i32
    return %arg0, %c0_i32, %c0_i32_0 : i32, i32, i32
  }
}

</mosaic_0001>

<llo_original>
// kernel: tpu_custom_call.1
$region0: #{tpu_custom_call.1}
  #allocation0 [shape = 'u32[]', space=smem, size = 0x4, offset = 0x4, fixed_abs, tag = 'smem constant byte address 0x4 - core index']
  #allocation1 [shape = 'u32[144,128]{1,0:T(1,128)}', space=vmem, size = 0x12000, scoped, tag = 'internal scratch']
  %s0 = inlined_call_operand.vmem [shape: f32[32,4], index: 0, kind: input, shape index: {}]
  %s1 = inlined_call_operand.hbm [shape: bf16[3,4,32], index: 1, kind: input, shape index: {}]
  %s2 = inlined_call_operand.vmem [shape: f32[1,32], index: 2, kind: input, shape index: {}]
  %s3 = inlined_call_operand.vmem [shape: bf16[3,32,32], index: 3, kind: input, shape index: {}]
  %s4 = inlined_call_operand.hbm [shape: f32[1,32], index: 4, kind: input, shape index: {}]
  %s5 = inlined_call_operand.vmem [shape: bf16[4,32], index: 5, kind: input, shape index: {}]
  %s6 = inlined_call_operand.vmem [shape: f32[1,32], index: 6, kind: input, shape index: {}]
  %s7 = inlined_call_operand.vmem [shape: bf16[3,32,32], index: 7, kind: input, shape index: {}]
  %s8 = inlined_call_operand.vmem [shape: f32[1,32], index: 8, kind: input, shape index: {}]
  %s9 = inlined_call_operand.hbm [shape: bf16[3,32,32], index: 9, kind: input, shape index: {}]
  %s10 = inlined_call_operand.vmem [shape: f32[1,32], index: 10, kind: input, shape index: {}]
  %s11 = inlined_call_operand.vmem [shape: bf16[3,32,8], index: 11, kind: input, shape index: {}]
  %s12 = inlined_call_operand.vmem [shape: f32[1,8], index: 12, kind: input, shape index: {}]
  %s13 = inlined_call_operand.hbm [shape: f32[2,1,8], index: 13, kind: output, shape index: {}]
  %s14 = sld [smem:[#allocation0]]
  $region97: #{tpu_custom_call.1} parent=0
    _
  %s16 = ssub.s32 1, %s14
  %s17 = scalar_select 0, %s16, %s14
  $region1: #{tpu_custom_call.1} parent=0
    #allocation2 [shape = 'u8[3072]{0}', space=vmem, size = 0xc00, scoped, tag = 'input window, operand 1, single buffered']
    #allocation3 [shape = 's32[2]{0}', space=sflag, size = 0x8, scoped, tag = 'scoped memory for tpu_custom_call.1']
    #allocation4 [shape = 's32[2]{0}', space=sflag, size = 0x8, scoped, tag = 'scoped memory for tpu_custom_call.1']
    #allocation5 [shape = 'u8[512]{0}', space=vmem, size = 0x400, scoped, tag = 'input window, operand 4, single buffered']
    #allocation6 [shape = 's32[1]{0}', space=sflag, size = 0x4, scoped, tag = 'scoped memory for tpu_custom_call.1']
    #allocation7 [shape = 'u8[24576]{0}', space=vmem, size = 0x6000, scoped, tag = 'input window, operand 9, single buffered']
    #allocation8 [shape = 'u8[1024]{0}', space=vmem, size = 0x400, scoped, tag = 'output window, operand 0']
    %18 = vsyncpa [#allocation3], 0
    %19 = vsyncpa [#allocation6], 0
    %20 = vsyncpa [#allocation4], 0
    %s21 = scalar_lea.sflag [#allocation4], 1
    %22 = vsyncpa %s21, 0
    loop: start=0, step=1, limit=4
    $region2: #{tpu_custom_call.1} parent=1 // loop_pre_header
      _
    $region3: #{tpu_custom_call.1} parent=1 // loop_header
      %s24 = sphi 0, %s28
      %p25 = scmp.ge.s32.totalorder %s24, 4
      %s34 = sphi 0, %s36
      %s37 = sphi 0, %s34
      %s38 = sphi 0, %s37
      %s54 = sphi 0, %s38
      %s58 = sphi 0, %s58
      %s60 = sphi 0, %s58
      %s61 = sphi 0, %s60
      %s75 = sphi 0, %s61
      %s79 = sphi 0, %s79
      %s81 = sphi 0, %s79
      %s82 = sphi 0, %s81
      %s96 = sphi 0, %s82
      %s100 = sphi 0, %s100
      %s102 = sphi 0, %s100
      %s103 = sphi 0, %s102
      %s117 = sphi 0, %s103
      %s121 = sphi 0, %s121
      %s123 = sphi 0, %s121
      %s124 = sphi 0, %s123
      %s138 = sphi 0, %s124
      %s142 = sphi 0, %s142
      %s144 = sphi 0, %s142
      %s145 = sphi 0, %s144
      %s159 = sphi 0, %s145
      %s163 = sphi 0, %s163
      %s165 = sphi 0, %s163
      %s166 = sphi 0, %s165
      %s180 = sphi 0, %s166
      %s184 = sphi 0, %s184
      %s186 = sphi 0, %s184
      %s187 = sphi 0, %s186
      %s201 = sphi 0, %s187
      %s205 = sphi 0, %s205
      %s207 = sphi 0, %s205
      %s208 = sphi 0, %s207
      %s222 = sphi 0, %s208
      %s226 = sphi 0, %s226
      %s228 = sphi 0, %s226
      %s229 = sphi 0, %s228
      %s243 = sphi 0, %s229
      %s247 = sphi 0, %s247
      %s249 = sphi 0, %s247
      %s250 = sphi 0, %s249
      %s264 = sphi 0, %s250
      %s268 = sphi 0, %s268
      %s270 = sphi 0, %s268
      %s271 = sphi 0, %s270
      %s285 = sphi 0, %s271
      %s289 = sphi 0, %s289
      %s291 = sphi 0, %s289
      %s292 = sphi 0, %s291
      %s306 = sphi 0, %s292
      %s312 = sphi 0, %s314
      %s315 = sphi 0, %s312
      %s316 = sphi 0, %s315
      %s332 = sphi 0, %s316
    $region4: #{tpu_custom_call.1} parent=1 // loop_header_branch
      %27 = sbr.rel (%p25) target = $region8
    $region5: #{tpu_custom_call.1} parent=1 // loop_body
      %s29 = ssub.s32 %s24, 1
      %s30 = ssub.s32 %s24, 2
      %s31 = sadd.s32 %s24, 1
      %s32 = ssub.s32 %s24, %s31
      %p33 = scmp.eq.s32.totalorder %s32, 0
      %s35 = sadd.s32 %s34, 1
      %s36 = scalar_select %p33, %s34, %s35
      %p39 = pneg %p33
      %p40 = scmp.eq.s32.totalorder %s24, 1
      %p41 = por %p39, %p40
      %p42 = scmp.ne.s32.totalorder %s34, %s37
      %p43 = scmp.eq.s32.totalorder %s24, 0
      %p44 = por %p42, %p43
      %p45 = scmp.ne.s32.totalorder %s34, %s37
      %p46 = scmp.eq.s32.totalorder %s29, 1
      %p47 = por %p45, %p46
      %p48 = scmp.ne.s32.totalorder %s37, %s38
      %p49 = scmp.eq.s32.totalorder %s29, 0
      %p50 = por %p48, %p49
      %p51 = scmp.ne.s32.totalorder %s37, %s38
      %p52 = scmp.eq.s32.totalorder %s30, 1
      %p53 = por %p51, %p52
      %p55 = scmp.ne.s32.totalorder %s38, %s54
      %p56 = scmp.eq.s32.totalorder %s30, 0
      %p57 = por %p55, %p56
      %s59 = sadd.s32 %s58, 1
      %p62 = scmp.eq.s32.totalorder %s24, 1
      %p63 = scmp.ne.s32.totalorder %s58, %s60
      %p64 = scmp.eq.s32.totalorder %s24, 0
      %p65 = por %p63, %p64
      %p66 = scmp.ne.s32.totalorder %s58, %s60
      %p67 = scmp.eq.s32.totalorder %s29, 1
      %p68 = por %p66, %p67
      %p69 = scmp.ne.s32.totalorder %s60, %s61
      %p70 = scmp.eq.s32.totalorder %s29, 0
      %p71 = por %p69, %p70
      %p72 = scmp.ne.s32.totalorder %s60, %s61
      %p73 = scmp.eq.s32.totalorder %s30, 1
      %p74 = por %p72, %p73
      %p76 = scmp.ne.s32.totalorder %s61, %s75
      %p77 = scmp.eq.s32.totalorder %s30, 0
      %p78 = por %p76, %p77
      %s80 = sadd.s32 %s79, 1
      %p83 = scmp.eq.s32.totalorder %s24, 1
      %p84 = scmp.ne.s32.totalorder %s79, %s81
      %p85 = scmp.eq.s32.totalorder %s24, 0
      %p86 = por %p84, %p85
      %p87 = scmp.ne.s32.totalorder %s79, %s81
      %p88 = scmp.eq.s32.totalorder %s29, 1
      %p89 = por %p87, %p88
      %p90 = scmp.ne.s32.totalorder %s81, %s82
      %p91 = scmp.eq.s32.totalorder %s29, 0
      %p92 = por %p90, %p91
      %p93 = scmp.ne.s32.totalorder %s81, %s82
      %p94 = scmp.eq.s32.totalorder %s30, 1
      %p95 = por %p93, %p94
      %p97 = scmp.ne.s32.totalorder %s82, %s96
      %p98 = scmp.eq.s32.totalorder %s30, 0
      %p99 = por %p97, %p98
      %s101 = sadd.s32 %s100, 1
      %p104 = scmp.eq.s32.totalorder %s24, 1
      %p105 = scmp.ne.s32.totalorder %s100, %s102
      %p106 = scmp.eq.s32.totalorder %s24, 0
      %p107 = por %p105, %p106
      %p108 = scmp.ne.s32.totalorder %s100, %s102
      %p109 = scmp.eq.s32.totalorder %s29, 1
      %p110 = por %p108, %p109
      %p111 = scmp.ne.s32.totalorder %s102, %s103
      %p112 = scmp.eq.s32.totalorder %s29, 0
      %p113 = por %p111, %p112
      %p114 = scmp.ne.s32.totalorder %s102, %s103
      %p115 = scmp.eq.s32.totalorder %s30, 1
      %p116 = por %p114, %p115
      %p118 = scmp.ne.s32.totalorder %s103, %s117
      %p119 = scmp.eq.s32.totalorder %s30, 0
      %p120 = por %p118, %p119
      %s122 = sadd.s32 %s121, 1
      %p125 = scmp.eq.s32.totalorder %s24, 1
      %p126 = scmp.ne.s32.totalorder %s121, %s123
      %p127 = scmp.eq.s32.totalorder %s24, 0
      %p128 = por %p126, %p127
      %p129 = scmp.ne.s32.totalorder %s121, %s123
      %p130 = scmp.eq.s32.totalorder %s29, 1
      %p131 = por %p129, %p130
      %p132 = scmp.ne.s32.totalorder %s123, %s124
      %p133 = scmp.eq.s32.totalorder %s29, 0
      %p134 = por %p132, %p133
      %p135 = scmp.ne.s32.totalorder %s123, %s124
      %p136 = scmp.eq.s32.totalorder %s30, 1
      %p137 = por %p135, %p136
      %p139 = scmp.ne.s32.totalorder %s124, %s138
      %p140 = scmp.eq.s32.totalorder %s30, 0
      %p141 = por %p139, %p140
      %s143 = sadd.s32 %s142, 1
      %p146 = scmp.eq.s32.totalorder %s24, 1
      %p147 = scmp.ne.s32.totalorder %s142, %s144
      %p148 = scmp.eq.s32.totalorder %s24, 0
      %p149 = por %p147, %p148
      %p150 = scmp.ne.s32.totalorder %s142, %s144
      %p151 = scmp.eq.s32.totalorder %s29, 1
      %p152 = por %p150, %p151
      %p153 = scmp.ne.s32.totalorder %s144, %s145
      %p154 = scmp.eq.s32.totalorder %s29, 0
      %p155 = por %p153, %p154
      %p156 = scmp.ne.s32.totalorder %s144, %s145
      %p157 = scmp.eq.s32.totalorder %s30, 1
      %p158 = por %p156, %p157
      %p160 = scmp.ne.s32.totalorder %s145, %s159
      %p161 = scmp.eq.s32.totalorder %s30, 0
      %p162 = por %p160, %p161
      %s164 = sadd.s32 %s163, 1
      %p167 = scmp.eq.s32.totalorder %s24, 1
      %p168 = scmp.ne.s32.totalorder %s163, %s165
      %p169 = scmp.eq.s32.totalorder %s24, 0
      %p170 = por %p168, %p169
      %p171 = scmp.ne.s32.totalorder %s163, %s165
      %p172 = scmp.eq.s32.totalorder %s29, 1
      %p173 = por %p171, %p172
      %p174 = scmp.ne.s32.totalorder %s165, %s166
      %p175 = scmp.eq.s32.totalorder %s29, 0
      %p176 = por %p174, %p175
      %p177 = scmp.ne.s32.totalorder %s165, %s166
      %p178 = scmp.eq.s32.totalorder %s30, 1
      %p179 = por %p177, %p178
      %p181 = scmp.ne.s32.totalorder %s166, %s180
      %p182 = scmp.eq.s32.totalorder %s30, 0
      %p183 = por %p181, %p182
      %s185 = sadd.s32 %s184, 1
      %p188 = scmp.eq.s32.totalorder %s24, 1
      %p189 = scmp.ne.s32.totalorder %s184, %s186
      %p190 = scmp.eq.s32.totalorder %s24, 0
      %p191 = por %p189, %p190
      %p192 = scmp.ne.s32.totalorder %s184, %s186
      %p193 = scmp.eq.s32.totalorder %s29, 1
      %p194 = por %p192, %p193
      %p195 = scmp.ne.s32.totalorder %s186, %s187
      %p196 = scmp.eq.s32.totalorder %s29, 0
      %p197 = por %p195, %p196
      %p198 = scmp.ne.s32.totalorder %s186, %s187
      %p199 = scmp.eq.s32.totalorder %s30, 1
      %p200 = por %p198, %p199
      %p202 = scmp.ne.s32.totalorder %s187, %s201
      %p203 = scmp.eq.s32.totalorder %s30, 0
      %p204 = por %p202, %p203
      %s206 = sadd.s32 %s205, 1
      %p209 = scmp.eq.s32.totalorder %s24, 1
      %p210 = scmp.ne.s32.totalorder %s205, %s207
      %p211 = scmp.eq.s32.totalorder %s24, 0
      %p212 = por %p210, %p211
      %p213 = scmp.ne.s32.totalorder %s205, %s207
      %p214 = scmp.eq.s32.totalorder %s29, 1
      %p215 = por %p213, %p214
      %p216 = scmp.ne.s32.totalorder %s207, %s208
      %p217 = scmp.eq.s32.totalorder %s29, 0
      %p218 = por %p216, %p217
      %p219 = scmp.ne.s32.totalorder %s207, %s208
      %p220 = scmp.eq.s32.totalorder %s30, 1
      %p221 = por %p219, %p220
      %p223 = scmp.ne.s32.totalorder %s208, %s222
      %p224 = scmp.eq.s32.totalorder %s30, 0
      %p225 = por %p223, %p224
      %s227 = sadd.s32 %s226, 1
      %p230 = scmp.eq.s32.totalorder %s24, 1
      %p231 = scmp.ne.s32.totalorder %s226, %s228
      %p232 = scmp.eq.s32.totalorder %s24, 0
      %p233 = por %p231, %p232
      %p234 = scmp.ne.s32.totalorder %s226, %s228
      %p235 = scmp.eq.s32.totalorder %s29, 1
      %p236 = por %p234, %p235
      %p237 = scmp.ne.s32.totalorder %s228, %s229
      %p238 = scmp.eq.s32.totalorder %s29, 0
      %p239 = por %p237, %p238
      %p240 = scmp.ne.s32.totalorder %s228, %s229
      %p241 = scmp.eq.s32.totalorder %s30, 1
      %p242 = por %p240, %p241
      %p244 = scmp.ne.s32.totalorder %s229, %s243
      %p245 = scmp.eq.s32.totalorder %s30, 0
      %p246 = por %p244, %p245
      %s248 = sadd.s32 %s247, 1
      %p251 = scmp.eq.s32.totalorder %s24, 1
      %p252 = scmp.ne.s32.totalorder %s247, %s249
      %p253 = scmp.eq.s32.totalorder %s24, 0
      %p254 = por %p252, %p253
      %p255 = scmp.ne.s32.totalorder %s247, %s249
      %p256 = scmp.eq.s32.totalorder %s29, 1
      %p257 = por %p255, %p256
      %p258 = scmp.ne.s32.totalorder %s249, %s250
      %p259 = scmp.eq.s32.totalorder %s29, 0
      %p260 = por %p258, %p259
      %p261 = scmp.ne.s32.totalorder %s249, %s250
      %p262 = scmp.eq.s32.totalorder %s30, 1
      %p263 = por %p261, %p262
      %p265 = scmp.ne.s32.totalorder %s250, %s264
      %p266 = scmp.eq.s32.totalorder %s30, 0
      %p267 = por %p265, %p266
      %s269 = sadd.s32 %s268, 1
      %p272 = scmp.eq.s32.totalorder %s24, 1
      %p273 = scmp.ne.s32.totalorder %s268, %s270
      %p274 = scmp.eq.s32.totalorder %s24, 0
      %p275 = por %p273, %p274
      %p276 = scmp.ne.s32.totalorder %s268, %s270
      %p277 = scmp.eq.s32.totalorder %s29, 1
      %p278 = por %p276, %p277
      %p279 = scmp.ne.s32.totalorder %s270, %s271
      %p280 = scmp.eq.s32.totalorder %s29, 0
      %p281 = por %p279, %p280
      %p282 = scmp.ne.s32.totalorder %s270, %s271
      %p283 = scmp.eq.s32.totalorder %s30, 1
      %p284 = por %p282, %p283
      %p286 = scmp.ne.s32.totalorder %s271, %s285
      %p287 = scmp.eq.s32.totalorder %s30, 0
      %p288 = por %p286, %p287
      %s290 = sadd.s32 %s289, 1
      %p293 = scmp.eq.s32.totalorder %s24, 1
      %p294 = scmp.ne.s32.totalorder %s289, %s291
      %p295 = scmp.eq.s32.totalorder %s24, 0
      %p296 = por %p294, %p295
      %p297 = scmp.ne.s32.totalorder %s289, %s291
      %p298 = scmp.eq.s32.totalorder %s29, 1
      %p299 = por %p297, %p298
      %p300 = scmp.ne.s32.totalorder %s291, %s292
      %p301 = scmp.eq.s32.totalorder %s29, 0
      %p302 = por %p300, %p301
      %p303 = scmp.ne.s32.totalorder %s291, %s292
      %p304 = scmp.eq.s32.totalorder %s30, 1
      %p305 = por %p303, %p304
      %p307 = scmp.ne.s32.totalorder %s292, %s306
      %p308 = scmp.eq.s32.totalorder %s30, 0
      %p309 = por %p307, %p308
      %s310 = ssub.s32 %s24, %s31
      %p311 = scmp.eq.s32.totalorder %s310, 0
      %s313 = sadd.s32 %s312, 1
      %s314 = scalar_select %p311, %s312, %s313
      %p317 = pneg %p311
      %p318 = scmp.eq.s32.totalorder %s24, 1
      %p319 = por %p317, %p318
      %p320 = scmp.ne.s32.totalorder %s312, %s315
      %p321 = scmp.eq.s32.totalorder %s24, 0
      %p322 = por %p320, %p321
      %p323 = scmp.ne.s32.totalorder %s312, %s315
      %p324 = scmp.eq.s32.totalorder %s29, 1
      %p325 = por %p323, %p324
      %p326 = scmp.ne.s32.totalorder %s315, %s316
      %p327 = scmp.eq.s32.totalorder %s29, 0
      %p328 = por %p326, %p327
      %p329 = scmp.ne.s32.totalorder %s315, %s316
      %p330 = scmp.eq.s32.totalorder %s30, 1
      %p331 = por %p329, %p330
      %p333 = scmp.ne.s32.totalorder %s316, %s332
      %p334 = scmp.eq.s32.totalorder %s30, 0
      %p335 = por %p333, %p334
      %p336 = scmp.le.s32.totalorder 1, %s24
      %p337 = scmp.lt.s32.totalorder %s24, 3
      %p338 = pnand %p336, %p337
      %p339 = pneg %p338
      // Predicated region
      $region9: #{tpu_custom_call.1} parent=5 // pred_check
        _
      $region10: #{tpu_custom_call.1} parent=5 // pred_check_branch
        %341 = sbr.rel (%p338) target = $region12
      $region11: #{tpu_custom_call.1} parent=5 // pred_region
        %s342 = ssub.s32 %s24, 1
        // Predicated region
        $region13: #{tpu_custom_call.1} parent=11 // pred_check
          %p343 = pneg %p71
        $region14: #{tpu_custom_call.1} parent=11 // pred_check_branch
          %345 = sbr.rel (%p343) target = $region16
        $region15: #{tpu_custom_call.1} parent=11 // pred_region
          %s347 = ssub.s32 96, 96
          %348 = vsyncadd [#allocation3], %s347
          %s349 = sshll.u32 [#allocation2], 4
          %s350 = int_to_ptr.vmem [resolvable:$true] %s349
          %355 = dma.hbm_to_vmem [thread:$0]  %s1, 96, %s350, [#allocation3], 32, 32, 2
        $region16: #{tpu_custom_call.1} parent=11 // pred_fallthru
          _
        // Predicated region
        $region17: #{tpu_custom_call.1} parent=11 // pred_check
          %p356 = pneg %p92
        $region18: #{tpu_custom_call.1} parent=11 // pred_check_branch
          %358 = sbr.rel (%p356) target = $region20
        $region19: #{tpu_custom_call.1} parent=11 // pred_region
          _
        $region20: #{tpu_custom_call.1} parent=11 // pred_fallthru
          _
        // Predicated region
        $region21: #{tpu_custom_call.1} parent=11 // pred_check
          %p359 = pneg %p113
        $region22: #{tpu_custom_call.1} parent=11 // pred_check_branch
          %361 = sbr.rel (%p359) target = $region24
        $region23: #{tpu_custom_call.1} parent=11 // pred_region
          _
        $region24: #{tpu_custom_call.1} parent=11 // pred_fallthru
          _
        // Predicated region
        $region25: #{tpu_custom_call.1} parent=11 // pred_check
          %p362 = pneg %p134
        $region26: #{tpu_custom_call.1} parent=11 // pred_check_branch
          %364 = sbr.rel (%p362) target = $region28
        $region27: #{tpu_custom_call.1} parent=11 // pred_region
          %s366 = ssub.s32 16, 16
          %367 = vsyncadd [#allocation6], %s366
          %s369 = sshll.u32 [#allocation5], 4
          %s370 = int_to_ptr.vmem [resolvable:$true] %s369
          %372 = dma.hbm_to_vmem [thread:$0]  %s4, 16, %s370, [#allocation6]
        $region28: #{tpu_custom_call.1} parent=11 // pred_fallthru
          _
        // Predicated region
        $region29: #{tpu_custom_call.1} parent=11 // pred_check
          %p373 = pneg %p155
        $region30: #{tpu_custom_call.1} parent=11 // pred_check_branch
          %375 = sbr.rel (%p373) target = $region32
        $region31: #{tpu_custom_call.1} parent=11 // pred_region
          _
        $region32: #{tpu_custom_call.1} parent=11 // pred_fallthru
          _
        // Predicated region
        $region33: #{tpu_custom_call.1} parent=11 // pred_check
          %p376 = pneg %p176
        $region34: #{tpu_custom_call.1} parent=11 // pred_check_branch
          %378 = sbr.rel (%p376) target = $region36
        $region35: #{tpu_custom_call.1} parent=11 // pred_region
          _
        $region36: #{tpu_custom_call.1} parent=11 // pred_fallthru
          _
        // Predicated region
        $region37: #{tpu_custom_call.1} parent=11 // pred_check
          %p379 = pneg %p197
        $region38: #{tpu_custom_call.1} parent=11 // pred_check_branch
          %381 = sbr.rel (%p379) target = $region40
        $region39: #{tpu_custom_call.1} parent=11 // pred_region
          _
        $region40: #{tpu_custom_call.1} parent=11 // pred_fallthru
          _
        // Predicated region
        $region41: #{tpu_custom_call.1} parent=11 // pred_check
          %p382 = pneg %p218
        $region42: #{tpu_custom_call.1} parent=11 // pred_check_branch
          %384 = sbr.rel (%p382) target = $region44
        $region43: #{tpu_custom_call.1} parent=11 // pred_region
          _
        $region44: #{tpu_custom_call.1} parent=11 // pred_fallthru
          _
        // Predicated region
        $region45: #{tpu_custom_call.1} parent=11 // pred_check
          %p385 = pneg %p239
        $region46: #{tpu_custom_call.1} parent=11 // pred_check_branch
          %387 = sbr.rel (%p385) target = $region48
        $region47: #{tpu_custom_call.1} parent=11 // pred_region
          %s389 = ssub.s32 768, 768
          %390 = vsyncadd [#allocation6], %s389
          %s391 = sshll.u32 [#allocation7], 4
          %s392 = int_to_ptr.vmem [resolvable:$true] %s391
          %397 = dma.hbm_to_vmem [thread:$0]  %s9, 768, %s392, [#allocation6], 64, 64, 4
        $region48: #{tpu_custom_call.1} parent=11 // pred_fallthru
          _
        // Predicated region
        $region49: #{tpu_custom_call.1} parent=11 // pred_check
          %p398 = pneg %p260
        $region50: #{tpu_custom_call.1} parent=11 // pred_check_branch
          %400 = sbr.rel (%p398) target = $region52
        $region51: #{tpu_custom_call.1} parent=11 // pred_region
          _
        $region52: #{tpu_custom_call.1} parent=11 // pred_fallthru
          _
        // Predicated region
        $region53: #{tpu_custom_call.1} parent=11 // pred_check
          %p401 = pneg %p281
        $region54: #{tpu_custom_call.1} parent=11 // pred_check_branch
          %403 = sbr.rel (%p401) target = $region56
        $region55: #{tpu_custom_call.1} parent=11 // pred_region
          _
        $region56: #{tpu_custom_call.1} parent=11 // pred_fallthru
          _
        // Predicated region
        $region57: #{tpu_custom_call.1} parent=11 // pred_check
          %p404 = pneg %p302
        $region58: #{tpu_custom_call.1} parent=11 // pred_check_branch
          %406 = sbr.rel (%p404) target = $region60
        $region59: #{tpu_custom_call.1} parent=11 // pred_region
          _
        $region60: #{tpu_custom_call.1} parent=11 // pred_fallthru
          _
      $region12: #{tpu_custom_call.1} parent=5 // pred_fallthru
        _
      %p407 = scmp.lt.s32.totalorder %s24, 2
      // Predicated region
      $region61: #{tpu_custom_call.1} parent=5 // pred_check
        %p408 = pneg %p407
      $region62: #{tpu_custom_call.1} parent=5 // pred_check_branch
        %410 = sbr.rel (%p408) target = $region64
      $region63: #{tpu_custom_call.1} parent=5 // pred_region
        // Predicated region
        $region65: #{tpu_custom_call.1} parent=63 // pred_check
          %p411 = pneg %p44
        $region66: #{tpu_custom_call.1} parent=63 // pred_check_branch
          %413 = sbr.rel (%p411) target = $region68
        $region67: #{tpu_custom_call.1} parent=63 // pred_region
          %s414 = smul.u32 2, %s24
          %p415 = scmp.lt.s32.totalorder %s414, 3
          %s416 = scalar_select %p415, %s414, 3
          %s417 = smul.addr %s416, 8
          %s418 = scalar_lea.vmem %s0, %s417
          %s419 = smul.u32 2, %s24
        $region68: #{tpu_custom_call.1} parent=63 // pred_fallthru
          _
      $region64: #{tpu_custom_call.1} parent=5 // pred_fallthru
        _
      %p420 = scmp.le.s32.totalorder 1, %s24
      %p421 = scmp.lt.s32.totalorder %s24, 3
      %p422 = pnand %p420, %p421
      %p423 = pneg %p422
      // Predicated region
      $region69: #{tpu_custom_call.1} parent=5 // pred_check
        _
      $region70: #{tpu_custom_call.1} parent=5 // pred_check_branch
        %425 = sbr.rel (%p422) target = $region72
      $region71: #{tpu_custom_call.1} parent=5 // pred_region
        %s426 = ssub.s32 %s24, 1
        // Predicated region
        $region73: #{tpu_custom_call.1} parent=71 // pred_check
          %p427 = pneg %p71
        $region74: #{tpu_custom_call.1} parent=71 // pred_check_branch
          %429 = sbr.rel (%p427) target = $region76
        $region75: #{tpu_custom_call.1} parent=71 // pred_region
          %430 = dma.done [#allocation3], 96
        $region76: #{tpu_custom_call.1} parent=71 // pred_fallthru
          _
        // Predicated region
        $region77: #{tpu_custom_call.1} parent=71 // pred_check
          %p431 = pneg %p134
        $region78: #{tpu_custom_call.1} parent=71 // pred_check_branch
          %433 = sbr.rel (%p431) target = $region80
        $region79: #{tpu_custom_call.1} parent=71 // pred_region
          %434 = dma.done [#allocation6], 16
        $region80: #{tpu_custom_call.1} parent=71 // pred_fallthru
          _
        // Predicated region
        $region81: #{tpu_custom_call.1} parent=71 // pred_check
          %p435 = pneg %p239
        $region82: #{tpu_custom_call.1} parent=71 // pred_check_branch
          %437 = sbr.rel (%p435) target = $region84
        $region83: #{tpu_custom_call.1} parent=71 // pred_region
          %438 = dma.done [#allocation6], 768
        $region84: #{tpu_custom_call.1} parent=71 // pred_fallthru
          _
        %s439 = smul.u32 2, %s29
        %p440 = scmp.lt.s32.totalorder %s439, 3
        %s441 = scalar_select %p440, %s439, 3
        %s442 = smul.addr %s441, 8
        %s443 = scalar_lea.vmem %s0, %s442
        %p444 = pneg %p50
        %p445 = pneg %p47
        %p446 = pneg %p71
        %p447 = pneg %p68
        %p448 = pneg %p92
        %p449 = pneg %p89
        %p450 = pneg %p113
        %p451 = pneg %p110
        %p452 = pneg %p134
        %p453 = pneg %p131
        %p454 = pneg %p155
        %p455 = pneg %p152
        %p456 = pneg %p176
        %p457 = pneg %p173
        %p458 = pneg %p197
        %p459 = pneg %p194
        %p460 = pneg %p218
        %p461 = pneg %p215
        %p462 = pneg %p239
        %p463 = pneg %p236
        %p464 = pneg %p260
        %p465 = pneg %p257
        %p466 = pneg %p281
        %p467 = pneg %p278
        %p468 = pneg %p302
        %p469 = pneg %p299
        %p470 = pneg %p328
        %p471 = pneg %p325
        %s472 = sand.u32 %s315, 1
        %s473 = scalar_lea.sflag [#allocation4], %s472
        %s474 = sand.u32 %s315, 1
        %s475 = scalar_lea.vmem [#allocation8], %s474
        %s476 = smul.u32 2, %s29
        %p477 = scmp.lt.s32.totalorder %s476, 3
        %s478 = scalar_select %p477, %s476, 3
        %s479 = smul.addr %s478, 8
        %s480 = scalar_lea.vmem %s0, %s479
        %s481 = smul.u32 2, %s29
        %v483 = vlaneseq
        %v484 = vshrl.u32 %v483, 7
        %v485 = vadd.s32 %v484, 8
        %vm486 = vcmp.lt.s32.totalorder %v484, 0
        %v487 = vsub.s32 0, %v484
        %v488 = vsel %vm486, %v487, %v484
        %v489 = vshrl.u32 %v488, 4
        %v490 = vand.u32 %v488, 15
        %v491 = vsub.s32 0, %v490
        %v492 = vsel %vm486, %v491, %v490
        %vm493 = vcmp.lt.s32.totalorder %v485, 0
        %v494 = vsub.s32 0, %v485
        %v495 = vsel %vm493, %v494, %v485
        %v496 = vshrl.u32 %v495, 4
        %v497 = vand.u32 %v495, 15
        %v498 = vsub.s32 0, %v497
        %v499 = vsel %vm493, %v498, %v497
        %vm500 = vcmp.ne.s32.totalorder %v492, 0
        %vm501 = vcmp.ne.s32.totalorder %v499, 0
        %vm502 = vcmp.lt.s32.totalorder %v492, 0
        %vm503 = vcmp.lt.s32.totalorder %v499, 0
        %vm504 = vmand %vm502, %vm500
        %vm505 = vmand %vm503, %vm501
        %v506 = vadd.s32 %v492, 16
        %v507 = vadd.s32 %v499, 16
        %v508 = vsel %vm504, %v506, %v492
        %v509 = vsel %vm505, %v507, %v499
        %v510 = vld [vmem:[%s480] sm:$0xff]
        %v511 = vld [vmem:[%s480 + $0x8] sm:$0xff]
        %v512 = vpack.c.bf16 %v511, %v510
        %v513 = vld [vmem:[%s5] sm:$0x3]
        %v514 = vld [vmem:[%s6] sm:$0x1]
        %v516 = vlaneseq
        %v517 = vshrl.u32 %v516, 7
        %v518 = vsub.s32 0, %v517
        %v519 = vrot.slane %v514, %v518
        %vm521 = vcmask 31744
        %v523 = vsel %vm521, %v512, 0
        %vm525 = vcmask 1041408
        %v527 = vsel %vm525, %v513, 0
        %529 = vmatprep.subr.bf16.mxu0 0
        %530 = vmatpush1.bf16.msra.mxu0 %v527
        %531 = vmatprep.subr.bf16.mxu0 0
        %532 = vmatpush1.bf16.msra.mxu0 0
        %533 = vmatprep.subr.bf16.mxu0 0
        %534 = vmatpush1.bf16.msra.mxu0 0
        %535 = vmatprep.subr.bf16.mxu0 0
        %536 = vmatpush1.bf16.msra.mxu0 0
        %537 = vmatprep.subr.bf16.mxu0 0
        %538 = vmatpush1.bf16.msra.mxu0 0
        %539 = vmatprep.subr.bf16.mxu0 0
        %540 = vmatpush1.bf16.msra.mxu0 0
        %541 = vmatprep.subr.bf16.mxu0 0
        %542 = vmatpush1.bf16.msra.mxu0 0
        %543 = vmatprep.subr.bf16.mxu0 0
        %544 = vmatpush1.bf16.msra.mxu0 0
        %545 = vmatprep.subr.bf16.mxu0 0
        %546 = vmatpush1.bf16.msra.mxu0 0
        %547 = vmatprep.subr.bf16.mxu0 0
        %548 = vmatpush1.bf16.msra.mxu0 0
        %549 = vmatprep.subr.bf16.mxu0 0
        %550 = vmatpush1.bf16.msra.mxu0 0
        %551 = vmatprep.subr.bf16.mxu0 0
        %552 = vmatpush1.bf16.msra.mxu0 0
        %553 = vmatprep.subr.bf16.mxu0 0
        %554 = vmatpush1.bf16.msra.mxu0 0
        %555 = vmatprep.subr.bf16.mxu0 0
        %556 = vmatpush1.bf16.msra.mxu0 0
        %557 = vmatprep.subr.bf16.mxu0 0
        %558 = vmatpush1.bf16.msra.mxu0 0
        %559 = vmatprep.subr.bf16.mxu0 0
        %560 = vmatpush1.bf16.msra.mxu0 0
        %561 = vmatprep.mubr.bf16.mxu0 0
        %562 = vmatmul.mubr.bf16.gmra.mrb[0].mxu0 %v523
        %v563 = vpop.f32.mrb[0].mxu0
        %v564 = vadd.f32 %v519, %v563
        %v565 = vpop.f32.mrb[0].mxu0
        %v566 = vpop.f32.mrb[0].mxu0
        %v567 = vadd.f32 %v519, %v566
        %v568 = vpop.f32.mrb[0].mxu0
        %569 = vdwg.mxu0
        %v570 = vrot.slane %v510, 6
        %v571 = vrot.slane %v511, 6
        %vm572 = vcmp.lt.s32.totalorder %v484, 2
        %v573 = vsel %vm572, %v570, %v571
        %v574 = vsel %vm572, %v571, %v570
        %vm575 = vcmp.ge.s32.totalorder %v508, 2
        %vm576 = vcmp.ge.s32.totalorder %v509, 2
        %v577 = vsel %vm575, 1, 0
        %v578 = vsel %vm576, 1, 0
        %vm579 = vcmp.eq.s32.totalorder %v577, 1
        %vm580 = vcmp.eq.s32.totalorder %v578, 1
        %v581 = vsel %vm579, %v574, 0.0
        %v582 = vsel %vm580, %v573, 0.0
        %v583 = vpack.c.bf16 %v582, %v581
        %v584 = vld [vmem:[#allocation2] sm:$0x3]
        %v585 = vrot.slane %v510, 7
        %v586 = vrot.slane %v511, 7
        %vm587 = vcmp.lt.s32.totalorder %v484, 1
        %v588 = vsel %vm587, %v585, %v586
        %v589 = vsel %vm587, %v586, %v585
        %vm590 = vcmp.ge.s32.totalorder %v508, 1
        %vm591 = vcmp.ge.s32.totalorder %v509, 1
        %v592 = vsel %vm590, 1, 0
        %v593 = vsel %vm591, 1, 0
        %vm594 = vcmp.eq.s32.totalorder %v592, 1
        %vm595 = vcmp.eq.s32.totalorder %v593, 1
        %v596 = vsel %vm594, %v589, 0.0
        %v597 = vsel %vm595, %v588, 0.0
        %v598 = vpack.c.bf16 %v597, %v596
        %s599 = scalar_lea.vmem [#allocation2], 2
        %v600 = vld [vmem:[%s599] sm:$0x3]
        %v602 = vsel %vm521, %v598, 0
        %v605 = vsel %vm525, %v600, 0
        %607 = vmatprep.subr.bf16.mxu0 0
        %608 = vmatpush1.bf16.msra.mxu0 %v605
        %609 = vmatprep.subr.bf16.mxu0 0
        %610 = vmatpush1.bf16.msra.mxu0 0
        %611 = vmatprep.subr.bf16.mxu0 0
        %612 = vmatpush1.bf16.msra.mxu0 0
        %613 = vmatprep.subr.bf16.mxu0 0
        %614 = vmatpush1.bf16.msra.mxu0 0
        %615 = vmatprep.subr.bf16.mxu0 0
        %616 = vmatpush1.bf16.msra.mxu0 0
        %617 = vmatprep.subr.bf16.mxu0 0
        %618 = vmatpush1.bf16.msra.mxu0 0
        %619 = vmatprep.subr.bf16.mxu0 0
        %620 = vmatpush1.bf16.msra.mxu0 0
        %621 = vmatprep.subr.bf16.mxu0 0
        %622 = vmatpush1.bf16.msra.mxu0 0
        %623 = vmatprep.subr.bf16.mxu0 0
        %624 = vmatpush1.bf16.msra.mxu0 0
        %625 = vmatprep.subr.bf16.mxu0 0
        %626 = vmatpush1.bf16.msra.mxu0 0
        %627 = vmatprep.subr.bf16.mxu0 0
        %628 = vmatpush1.bf16.msra.mxu0 0
        %629 = vmatprep.subr.bf16.mxu0 0
        %630 = vmatpush1.bf16.msra.mxu0 0
        %631 = vmatprep.subr.bf16.mxu0 0
        %632 = vmatpush1.bf16.msra.mxu0 0
        %633 = vmatprep.subr.bf16.mxu0 0
        %634 = vmatpush1.bf16.msra.mxu0 0
        %635 = vmatprep.subr.bf16.mxu0 0
        %636 = vmatpush1.bf16.msra.mxu0 0
        %637 = vmatprep.subr.bf16.mxu0 0
        %638 = vmatpush1.bf16.msra.mxu0 0
        %639 = vmatprep.mubr.bf16.mxu0 0
        %640 = vmatmul.mubr.bf16.gmra.mrb[0].mxu0 %v602
        %v641 = vpop.f32.mrb[0].mxu0
        %v642 = vadd.f32 0.0, %v641
        %v643 = vpop.f32.mrb[0].mxu0
        %v644 = vpop.f32.mrb[0].mxu0
        %v645 = vadd.f32 0.0, %v644
        %v646 = vpop.f32.mrb[0].mxu0
        %647 = vdwg.mxu0
        %v649 = vsel %vm521, %v583, 0
        %v652 = vsel %vm525, %v584, 0
        %654 = vmatprep.subr.bf16.mxu0 0
        %655 = vmatpush1.bf16.msra.mxu0 %v652
        %656 = vmatprep.subr.bf16.mxu0 0
        %657 = vmatpush1.bf16.msra.mxu0 0
        %658 = vmatprep.subr.bf16.mxu0 0
        %659 = vmatpush1.bf16.msra.mxu0 0
        %660 = vmatprep.subr.bf16.mxu0 0
        %661 = vmatpush1.bf16.msra.mxu0 0
        %662 = vmatprep.subr.bf16.mxu0 0
        %663 = vmatpush1.bf16.msra.mxu0 0
        %664 = vmatprep.subr.bf16.mxu0 0
        %665 = vmatpush1.bf16.msra.mxu0 0
        %666 = vmatprep.subr.bf16.mxu0 0
        %667 = vmatpush1.bf16.msra.mxu0 0
        %668 = vmatprep.subr.bf16.mxu0 0
        %669 = vmatpush1.bf16.msra.mxu0 0
        %670 = vmatprep.subr.bf16.mxu0 0
        %671 = vmatpush1.bf16.msra.mxu0 0
        %672 = vmatprep.subr.bf16.mxu0 0
        %673 = vmatpush1.bf16.msra.mxu0 0
        %674 = vmatprep.subr.bf16.mxu0 0
        %675 = vmatpush1.bf16.msra.mxu0 0
        %676 = vmatprep.subr.bf16.mxu0 0
        %677 = vmatpush1.bf16.msra.mxu0 0
        %678 = vmatprep.subr.bf16.mxu0 0
        %679 = vmatpush1.bf16.msra.mxu0 0
        %680 = vmatprep.subr.bf16.mxu0 0
        %681 = vmatpush1.bf16.msra.mxu0 0
        %682 = vmatprep.subr.bf16.mxu0 0
        %683 = vmatpush1.bf16.msra.mxu0 0
        %684 = vmatprep.subr.bf16.mxu0 0
        %685 = vmatpush1.bf16.msra.mxu0 0
        %686 = vmatprep.mubr.bf16.mxu0 0
        %687 = vmatmul.mubr.bf16.gmra.mrb[0].mxu0 %v649
        %v688 = vpop.f32.mrb[0].mxu0
        %v689 = vadd.f32 %v642, %v688
        %v690 = vpop.f32.mrb[0].mxu0
        %v691 = vpop.f32.mrb[0].mxu0
        %v692 = vadd.f32 %v645, %v691
        %v693 = vpop.f32.mrb[0].mxu0
        %694 = vdwg.mxu0
        %s695 = scalar_lea.vmem [#allocation2], 4
        %v696 = vld [vmem:[%s695] sm:$0x3]
        %v698 = vsel %vm525, %v696, 0
        %700 = vmatprep.subr.bf16.mxu0 0
        %701 = vmatpush1.bf16.msra.mxu0 %v698
        %702 = vmatprep.subr.bf16.mxu0 0
        %703 = vmatpush1.bf16.msra.mxu0 0
        %704 = vmatprep.subr.bf16.mxu0 0
        %705 = vmatpush1.bf16.msra.mxu0 0
        %706 = vmatprep.subr.bf16.mxu0 0
        %707 = vmatpush1.bf16.msra.mxu0 0
        %708 = vmatprep.subr.bf16.mxu0 0
        %709 = vmatpush1.bf16.msra.mxu0 0
        %710 = vmatprep.subr.bf16.mxu0 0
        %711 = vmatpush1.bf16.msra.mxu0 0
        %712 = vmatprep.subr.bf16.mxu0 0
        %713 = vmatpush1.bf16.msra.mxu0 0
        %714 = vmatprep.subr.bf16.mxu0 0
        %715 = vmatpush1.bf16.msra.mxu0 0
        %716 = vmatprep.subr.bf16.mxu0 0
        %717 = vmatpush1.bf16.msra.mxu0 0
        %718 = vmatprep.subr.bf16.mxu0 0
        %719 = vmatpush1.bf16.msra.mxu0 0
        %720 = vmatprep.subr.bf16.mxu0 0
        %721 = vmatpush1.bf16.msra.mxu0 0
        %722 = vmatprep.subr.bf16.mxu0 0
        %723 = vmatpush1.bf16.msra.mxu0 0
        %724 = vmatprep.subr.bf16.mxu0 0
        %725 = vmatpush1.bf16.msra.mxu0 0
        %726 = vmatprep.subr.bf16.mxu0 0
        %727 = vmatpush1.bf16.msra.mxu0 0
        %728 = vmatprep.subr.bf16.mxu0 0
        %729 = vmatpush1.bf16.msra.mxu0 0
        %730 = vmatprep.subr.bf16.mxu0 0
        %731 = vmatpush1.bf16.msra.mxu0 0
        %732 = vmatprep.mubr.bf16.mxu0 0
        %733 = vmatmul.mubr.bf16.gmra.mrb[0].mxu0 %v523
        %v734 = vpop.f32.mrb[0].mxu0
        %v735 = vadd.f32 0.0, %v734
        %v736 = vpop.f32.mrb[0].mxu0
        %v737 = vpop.f32.mrb[0].mxu0
        %v738 = vadd.f32 0.0, %v737
        %v739 = vpop.f32.mrb[0].mxu0
        %740 = vdwg.mxu0
        %v741 = vadd.f32 %v689, %v735
        %v742 = vadd.f32 %v692, %v738
        %v743 = vld [vmem:[%s2] sm:$0x1]
        %v745 = vlaneseq
        %v746 = vshrl.u32 %v745, 7
        %v747 = vsub.s32 0, %v746
        %v748 = vrot.slane %v743, %v747
        %v750 = vadd.f32 %v741, %v748
        %v751 = vadd.f32 %v742, %v748
        %v752 = vmax.f32 %v750, 0.0
        %v753 = vmax.f32 %v751, 0.0
        %v754 = vpack.c.bf16 %v753, %v752
        %v755 = vrot.slane %v752, 6
        %v756 = vrot.slane %v753, 6
        %v757 = vsel %vm572, %v755, %v756
        %v758 = vsel %vm572, %v756, %v755
        %v759 = vsel %vm579, %v758, 0.0
        %v760 = vsel %vm580, %v757, 0.0
        %v761 = vpack.c.bf16 %v760, %v759
        %v762 = vld [vmem:[%s3] sm:$0xf]
        %v763 = vld [vmem:[%s3 + $0x4] sm:$0xf]
        %v764 = vld [vmem:[%s3 + $0x8] sm:$0xf]
        %v765 = vld [vmem:[%s3 + $0xc] sm:$0xf]
        %v766 = vrot.slane %v752, 7
        %v767 = vrot.slane %v753, 7
        %v768 = vsel %vm587, %v766, %v767
        %v769 = vsel %vm587, %v767, %v766
        %v770 = vsel %vm594, %v769, 0.0
        %v771 = vsel %vm595, %v768, 0.0
        %v772 = vpack.c.bf16 %v771, %v770
        %s773 = scalar_lea.vmem %s3, 16
        %v774 = vld [vmem:[%s773] sm:$0xf]
        %v775 = vld [vmem:[%s773 + $0x4] sm:$0xf]
        %v776 = vld [vmem:[%s773 + $0x8] sm:$0xf]
        %v777 = vld [vmem:[%s773 + $0xc] sm:$0xf]
        %v782 = vunpack.c.l.b16 %v774
        %v783 = vunpack.c.l.b16 %v775
        %v784 = vunpack.c.l.b16 %v776
        %v785 = vunpack.c.l.b16 %v777
        %v786 = vpack.c.b16 %v783, %v782
        %v787 = vpack.c.b16 %v785, %v784
        %vm790 = vcmask 261120
        %v792 = vsel %vm790, %v772, 0
        %794 = vmatprep.subr.bf16.mxu0 0
        %795 = vmatpush1.bf16.msra.mxu0 %v786
        %796 = vmatprep.subr.bf16.mxu0 0
        %797 = vmatpush1.bf16.msra.mxu0 %v787
        %798 = vmatprep.subr.bf16.mxu0 0
        %799 = vmatpush1.bf16.msra.mxu0 0
        %800 = vmatprep.subr.bf16.mxu0 0
        %801 = vmatpush1.bf16.msra.mxu0 0
        %802 = vmatprep.subr.bf16.mxu0 0
        %803 = vmatpush1.bf16.msra.mxu0 0
        %804 = vmatprep.subr.bf16.mxu0 0
        %805 = vmatpush1.bf16.msra.mxu0 0
        %806 = vmatprep.subr.bf16.mxu0 0
        %807 = vmatpush1.bf16.msra.mxu0 0
        %808 = vmatprep.subr.bf16.mxu0 0
        %809 = vmatpush1.bf16.msra.mxu0 0
        %810 = vmatprep.subr.bf16.mxu0 0
        %811 = vmatpush1.bf16.msra.mxu0 0
        %812 = vmatprep.subr.bf16.mxu0 0
        %813 = vmatpush1.bf16.msra.mxu0 0
        %814 = vmatprep.subr.bf16.mxu0 0
        %815 = vmatpush1.bf16.msra.mxu0 0
        %816 = vmatprep.subr.bf16.mxu0 0
        %817 = vmatpush1.bf16.msra.mxu0 0
        %818 = vmatprep.subr.bf16.mxu0 0
        %819 = vmatpush1.bf16.msra.mxu0 0
        %820 = vmatprep.subr.bf16.mxu0 0
        %821 = vmatpush1.bf16.msra.mxu0 0
        %822 = vmatprep.subr.bf16.mxu0 0
        %823 = vmatpush1.bf16.msra.mxu0 0
        %824 = vmatprep.subr.bf16.mxu0 0
        %825 = vmatpush1.bf16.msra.mxu0 0
        %826 = vmatprep.mubr.bf16.mxu0 0
        %827 = vmatmul.mubr.bf16.gmra.mrb[0].mxu0 %v792
        %v828 = vpop.f32.mrb[0].mxu0
        %v829 = vadd.f32 0.0, %v828
        %v830 = vpop.f32.mrb[0].mxu0
        %v831 = vpop.f32.mrb[0].mxu0
        %v832 = vadd.f32 0.0, %v831
        %v833 = vpop.f32.mrb[0].mxu0
        %834 = vdwg.mxu0
        %v839 = vunpack.c.l.b16 %v762
        %v840 = vunpack.c.l.b16 %v763
        %v841 = vunpack.c.l.b16 %v764
        %v842 = vunpack.c.l.b16 %v765
        %v843 = vpack.c.b16 %v840, %v839
        %v844 = vpack.c.b16 %v842, %v841
        %v848 = vsel %vm790, %v761, 0
        %850 = vmatprep.subr.bf16.mxu0 0
        %851 = vmatpush1.bf16.msra.mxu0 %v843
        %852 = vmatprep.subr.bf16.mxu0 0
        %853 = vmatpush1.bf16.msra.mxu0 %v844
        %854 = vmatprep.subr.bf16.mxu0 0
        %855 = vmatpush1.bf16.msra.mxu0 0
        %856 = vmatprep.subr.bf16.mxu0 0
        %857 = vmatpush1.bf16.msra.mxu0 0
        %858 = vmatprep.subr.bf16.mxu0 0
        %859 = vmatpush1.bf16.msra.mxu0 0
        %860 = vmatprep.subr.bf16.mxu0 0
        %861 = vmatpush1.bf16.msra.mxu0 0
        %862 = vmatprep.subr.bf16.mxu0 0
        %863 = vmatpush1.bf16.msra.mxu0 0
        %864 = vmatprep.subr.bf16.mxu0 0
        %865 = vmatpush1.bf16.msra.mxu0 0
        %866 = vmatprep.subr.bf16.mxu0 0
        %867 = vmatpush1.bf16.msra.mxu0 0
        %868 = vmatprep.subr.bf16.mxu0 0
        %869 = vmatpush1.bf16.msra.mxu0 0
        %870 = vmatprep.subr.bf16.mxu0 0
        %871 = vmatpush1.bf16.msra.mxu0 0
        %872 = vmatprep.subr.bf16.mxu0 0
        %873 = vmatpush1.bf16.msra.mxu0 0
        %874 = vmatprep.subr.bf16.mxu0 0
        %875 = vmatpush1.bf16.msra.mxu0 0
        %876 = vmatprep.subr.bf16.mxu0 0
        %877 = vmatpush1.bf16.msra.mxu0 0
        %878 = vmatprep.subr.bf16.mxu0 0
        %879 = vmatpush1.bf16.msra.mxu0 0
        %880 = vmatprep.subr.bf16.mxu0 0
        %881 = vmatpush1.bf16.msra.mxu0 0
        %882 = vmatprep.mubr.bf16.mxu0 0
        %883 = vmatmul.mubr.bf16.gmra.mrb[0].mxu0 %v848
        %v884 = vpop.f32.mrb[0].mxu0
        %v885 = vadd.f32 %v829, %v884
        %v886 = vpop.f32.mrb[0].mxu0
        %v887 = vpop.f32.mrb[0].mxu0
        %v888 = vadd.f32 %v832, %v887
        %v889 = vpop.f32.mrb[0].mxu0
        %890 = vdwg.mxu0
        %s891 = scalar_lea.vmem %s3, 32
        %v892 = vld [vmem:[%s891] sm:$0xf]
        %v893 = vld [vmem:[%s891 + $0x4] sm:$0xf]
        %v894 = vld [vmem:[%s891 + $0x8] sm:$0xf]
        %v895 = vld [vmem:[%s891 + $0xc] sm:$0xf]
        %v900 = vunpack.c.l.b16 %v892
        %v901 = vunpack.c.l.b16 %v893
        %v902 = vunpack.c.l.b16 %v894
        %v903 = vunpack.c.l.b16 %v895
        %v904 = vpack.c.b16 %v901, %v900
        %v905 = vpack.c.b16 %v903, %v902
        %v909 = vsel %vm790, %v754, 0
        %911 = vmatprep.subr.bf16.mxu0 0
        %912 = vmatpush1.bf16.msra.mxu0 %v904
        %913 = vmatprep.subr.bf16.mxu0 0
        %914 = vmatpush1.bf16.msra.mxu0 %v905
        %915 = vmatprep.subr.bf16.mxu0 0
        %916 = vmatpush1.bf16.msra.mxu0 0
        %917 = vmatprep.subr.bf16.mxu0 0
        %918 = vmatpush1.bf16.msra.mxu0 0
        %919 = vmatprep.subr.bf16.mxu0 0
        %920 = vmatpush1.bf16.msra.mxu0 0
        %921 = vmatprep.subr.bf16.mxu0 0
        %922 = vmatpush1.bf16.msra.mxu0 0
        %923 = vmatprep.subr.bf16.mxu0 0
        %924 = vmatpush1.bf16.msra.mxu0 0
        %925 = vmatprep.subr.bf16.mxu0 0
        %926 = vmatpush1.bf16.msra.mxu0 0
        %927 = vmatprep.subr.bf16.mxu0 0
        %928 = vmatpush1.bf16.msra.mxu0 0
        %929 = vmatprep.subr.bf16.mxu0 0
        %930 = vmatpush1.bf16.msra.mxu0 0
        %931 = vmatprep.subr.bf16.mxu0 0
        %932 = vmatpush1.bf16.msra.mxu0 0
        %933 = vmatprep.subr.bf16.mxu0 0
        %934 = vmatpush1.bf16.msra.mxu0 0
        %935 = vmatprep.subr.bf16.mxu0 0
        %936 = vmatpush1.bf16.msra.mxu0 0
        %937 = vmatprep.subr.bf16.mxu0 0
        %938 = vmatpush1.bf16.msra.mxu0 0
        %939 = vmatprep.subr.bf16.mxu0 0
        %940 = vmatpush1.bf16.msra.mxu0 0
        %941 = vmatprep.subr.bf16.mxu0 0
        %942 = vmatpush1.bf16.msra.mxu0 0
        %943 = vmatprep.mubr.bf16.mxu0 0
        %944 = vmatmul.mubr.bf16.gmra.mrb[0].mxu0 %v909
        %v945 = vpop.f32.mrb[0].mxu0
        %v946 = vadd.f32 0.0, %v945
        %v947 = vpop.f32.mrb[0].mxu0
        %v948 = vpop.f32.mrb[0].mxu0
        %v949 = vadd.f32 0.0, %v948
        %v950 = vpop.f32.mrb[0].mxu0
        %951 = vdwg.mxu0
        %v952 = vadd.f32 %v885, %v946
        %v953 = vadd.f32 %v888, %v949
        %v954 = vld [vmem:[#allocation5] sm:$0x1]
        %v956 = vlaneseq
        %v957 = vshrl.u32 %v956, 7
        %v958 = vsub.s32 0, %v957
        %v959 = vrot.slane %v954, %v958
        %v961 = vadd.f32 %v952, %v959
        %v962 = vadd.f32 %v953, %v959
        %v963 = vmax.f32 %v961, 0.0
        %v964 = vmax.f32 %v962, 0.0
        %v965 = vadd.f32 %v963, %v564
        %v966 = vadd.f32 %v964, %v567
        %v967 = vmax.f32 %v965, 0.0
        %v968 = vmax.f32 %v966, 0.0
        %v969 = vpack.c.bf16 %v968, %v967
        %v970 = vrot.slane %v967, 4
        %v971 = vrot.slane %v968, 4
        %vm972 = vcmp.lt.s32.totalorder %v484, 4
        %v973 = vsel %vm972, %v970, %v971
        %v974 = vsel %vm972, %v971, %v970
        %vm975 = vcmp.ge.s32.totalorder %v508, 4
        %vm976 = vcmp.ge.s32.totalorder %v509, 4
        %v977 = vsel %vm975, 1, 0
        %v978 = vsel %vm976, 1, 0
        %vm979 = vcmp.eq.s32.totalorder %v977, 1
        %vm980 = vcmp.eq.s32.totalorder %v978, 1
        %v981 = vsel %vm979, %v974, 0.0
        %v982 = vsel %vm980, %v973, 0.0
        %v983 = vpack.c.bf16 %v982, %v981
        %v984 = vld [vmem:[%s7] sm:$0xf]
        %v985 = vld [vmem:[%s7 + $0x4] sm:$0xf]
        %v986 = vld [vmem:[%s7 + $0x8] sm:$0xf]
        %v987 = vld [vmem:[%s7 + $0xc] sm:$0xf]
        %v988 = vrot.slane %v967, 6
        %v989 = vrot.slane %v968, 6
        %v990 = vsel %vm572, %v988, %v989
        %v991 = vsel %vm572, %v989, %v988
        %v992 = vsel %vm579, %v991, 0.0
        %v993 = vsel %vm580, %v990, 0.0
        %v994 = vpack.c.bf16 %v993, %v992
        %s995 = scalar_lea.vmem %s7, 16
        %v996 = vld [vmem:[%s995] sm:$0xf]
        %v997 = vld [vmem:[%s995 + $0x4] sm:$0xf]
        %v998 = vld [vmem:[%s995 + $0x8] sm:$0xf]
        %v999 = vld [vmem:[%s995 + $0xc] sm:$0xf]
        %v1004 = vunpack.c.l.b16 %v996
        %v1005 = vunpack.c.l.b16 %v997
        %v1006 = vunpack.c.l.b16 %v998
        %v1007 = vunpack.c.l.b16 %v999
        %v1008 = vpack.c.b16 %v1005, %v1004
        %v1009 = vpack.c.b16 %v1007, %v1006
        %v1013 = vsel %vm790, %v994, 0
        %1015 = vmatprep.subr.bf16.mxu0 0
        %1016 = vmatpush1.bf16.msra.mxu0 %v1008
        %1017 = vmatprep.subr.bf16.mxu0 0
        %1018 = vmatpush1.bf16.msra.mxu0 %v1009
        %1019 = vmatprep.subr.bf16.mxu0 0
        %1020 = vmatpush1.bf16.msra.mxu0 0
        %1021 = vmatprep.subr.bf16.mxu0 0
        %1022 = vmatpush1.bf16.msra.mxu0 0
        %1023 = vmatprep.subr.bf16.mxu0 0
        %1024 = vmatpush1.bf16.msra.mxu0 0
        %1025 = vmatprep.subr.bf16.mxu0 0
        %1026 = vmatpush1.bf16.msra.mxu0 0
        %1027 = vmatprep.subr.bf16.mxu0 0
        %1028 = vmatpush1.bf16.msra.mxu0 0
        %1029 = vmatprep.subr.bf16.mxu0 0
        %1030 = vmatpush1.bf16.msra.mxu0 0
        %1031 = vmatprep.subr.bf16.mxu0 0
        %1032 = vmatpush1.bf16.msra.mxu0 0
        %1033 = vmatprep.subr.bf16.mxu0 0
        %1034 = vmatpush1.bf16.msra.mxu0 0
        %1035 = vmatprep.subr.bf16.mxu0 0
        %1036 = vmatpush1.bf16.msra.mxu0 0
        %1037 = vmatprep.subr.bf16.mxu0 0
        %1038 = vmatpush1.bf16.msra.mxu0 0
        %1039 = vmatprep.subr.bf16.mxu0 0
        %1040 = vmatpush1.bf16.msra.mxu0 0
        %1041 = vmatprep.subr.bf16.mxu0 0
        %1042 = vmatpush1.bf16.msra.mxu0 0
        %1043 = vmatprep.subr.bf16.mxu0 0
        %1044 = vmatpush1.bf16.msra.mxu0 0
        %1045 = vmatprep.subr.bf16.mxu0 0
        %1046 = vmatpush1.bf16.msra.mxu0 0
        %1047 = vmatprep.mubr.bf16.mxu0 0
        %1048 = vmatmul.mubr.bf16.gmra.mrb[0].mxu0 %v1013
        %v1049 = vpop.f32.mrb[0].mxu0
        %v1050 = vadd.f32 0.0, %v1049
        %v1051 = vpop.f32.mrb[0].mxu0
        %v1052 = vpop.f32.mrb[0].mxu0
        %v1053 = vadd.f32 0.0, %v1052
        %v1054 = vpop.f32.mrb[0].mxu0
        %1055 = vdwg.mxu0
        %v1060 = vunpack.c.l.b16 %v984
        %v1061 = vunpack.c.l.b16 %v985
        %v1062 = vunpack.c.l.b16 %v986
        %v1063 = vunpack.c.l.b16 %v987
        %v1064 = vpack.c.b16 %v1061, %v1060
        %v1065 = vpack.c.b16 %v1063, %v1062
        %v1069 = vsel %vm790, %v983, 0
        %1071 = vmatprep.subr.bf16.mxu0 0
        %1072 = vmatpush1.bf16.msra.mxu0 %v1064
        %1073 = vmatprep.subr.bf16.mxu0 0
        %1074 = vmatpush1.bf16.msra.mxu0 %v1065
        %1075 = vmatprep.subr.bf16.mxu0 0
        %1076 = vmatpush1.bf16.msra.mxu0 0
        %1077 = vmatprep.subr.bf16.mxu0 0
        %1078 = vmatpush1.bf16.msra.mxu0 0
        %1079 = vmatprep.subr.bf16.mxu0 0
        %1080 = vmatpush1.bf16.msra.mxu0 0
        %1081 = vmatprep.subr.bf16.mxu0 0
        %1082 = vmatpush1.bf16.msra.mxu0 0
        %1083 = vmatprep.subr.bf16.mxu0 0
        %1084 = vmatpush1.bf16.msra.mxu0 0
        %1085 = vmatprep.subr.bf16.mxu0 0
        %1086 = vmatpush1.bf16.msra.mxu0 0
        %1087 = vmatprep.subr.bf16.mxu0 0
        %1088 = vmatpush1.bf16.msra.mxu0 0
        %1089 = vmatprep.subr.bf16.mxu0 0
        %1090 = vmatpush1.bf16.msra.mxu0 0
        %1091 = vmatprep.subr.bf16.mxu0 0
        %1092 = vmatpush1.bf16.msra.mxu0 0
        %1093 = vmatprep.subr.bf16.mxu0 0
        %1094 = vmatpush1.bf16.msra.mxu0 0
        %1095 = vmatprep.subr.bf16.mxu0 0
        %1096 = vmatpush1.bf16.msra.mxu0 0
        %1097 = vmatprep.subr.bf16.mxu0 0
        %1098 = vmatpush1.bf16.msra.mxu0 0
        %1099 = vmatprep.subr.bf16.mxu0 0
        %1100 = vmatpush1.bf16.msra.mxu0 0
        %1101 = vmatprep.subr.bf16.mxu0 0
        %1102 = vmatpush1.bf16.msra.mxu0 0
        %1103 = vmatprep.mubr.bf16.mxu0 0
        %1104 = vmatmul.mubr.bf16.gmra.mrb[0].mxu0 %v1069
        %v1105 = vpop.f32.mrb[0].mxu0
        %v1106 = vadd.f32 %v1050, %v1105
        %v1107 = vpop.f32.mrb[0].mxu0
        %v1108 = vpop.f32.mrb[0].mxu0
        %v1109 = vadd.f32 %v1053, %v1108
        %v1110 = vpop.f32.mrb[0].mxu0
        %1111 = vdwg.mxu0
        %s1112 = scalar_lea.vmem %s7, 32
        %v1113 = vld [vmem:[%s1112] sm:$0xf]
        %v1114 = vld [vmem:[%s1112 + $0x4] sm:$0xf]
        %v1115 = vld [vmem:[%s1112 + $0x8] sm:$0xf]
        %v1116 = vld [vmem:[%s1112 + $0xc] sm:$0xf]
        %v1121 = vunpack.c.l.b16 %v1113
        %v1122 = vunpack.c.l.b16 %v1114
        %v1123 = vunpack.c.l.b16 %v1115
        %v1124 = vunpack.c.l.b16 %v1116
        %v1125 = vpack.c.b16 %v1122, %v1121
        %v1126 = vpack.c.b16 %v1124, %v1123
        %v1130 = vsel %vm790, %v969, 0
        %1132 = vmatprep.subr.bf16.mxu0 0
        %1133 = vmatpush1.bf16.msra.mxu0 %v1125
        %1134 = vmatprep.subr.bf16.mxu0 0
        %1135 = vmatpush1.bf16.msra.mxu0 %v1126
        %1136 = vmatprep.subr.bf16.mxu0 0
        %1137 = vmatpush1.bf16.msra.mxu0 0
        %1138 = vmatprep.subr.bf16.mxu0 0
        %1139 = vmatpush1.bf16.msra.mxu0 0
        %1140 = vmatprep.subr.bf16.mxu0 0
        %1141 = vmatpush1.bf16.msra.mxu0 0
        %1142 = vmatprep.subr.bf16.mxu0 0
        %1143 = vmatpush1.bf16.msra.mxu0 0
        %1144 = vmatprep.subr.bf16.mxu0 0
        %1145 = vmatpush1.bf16.msra.mxu0 0
        %1146 = vmatprep.subr.bf16.mxu0 0
        %1147 = vmatpush1.bf16.msra.mxu0 0
        %1148 = vmatprep.subr.bf16.mxu0 0
        %1149 = vmatpush1.bf16.msra.mxu0 0
        %1150 = vmatprep.subr.bf16.mxu0 0
        %1151 = vmatpush1.bf16.msra.mxu0 0
        %1152 = vmatprep.subr.bf16.mxu0 0
        %1153 = vmatpush1.bf16.msra.mxu0 0
        %1154 = vmatprep.subr.bf16.mxu0 0
        %1155 = vmatpush1.bf16.msra.mxu0 0
        %1156 = vmatprep.subr.bf16.mxu0 0
        %1157 = vmatpush1.bf16.msra.mxu0 0
        %1158 = vmatprep.subr.bf16.mxu0 0
        %1159 = vmatpush1.bf16.msra.mxu0 0
        %1160 = vmatprep.subr.bf16.mxu0 0
        %1161 = vmatpush1.bf16.msra.mxu0 0
        %1162 = vmatprep.subr.bf16.mxu0 0
        %1163 = vmatpush1.bf16.msra.mxu0 0
        %1164 = vmatprep.mubr.bf16.mxu0 0
        %1165 = vmatmul.mubr.bf16.gmra.mrb[0].mxu0 %v1130
        %v1166 = vpop.f32.mrb[0].mxu0
        %v1167 = vadd.f32 0.0, %v1166
        %v1168 = vpop.f32.mrb[0].mxu0
        %v1169 = vpop.f32.mrb[0].mxu0
        %v1170 = vadd.f32 0.0, %v1169
        %v1171 = vpop.f32.mrb[0].mxu0
        %1172 = vdwg.mxu0
        %v1173 = vadd.f32 %v1106, %v1167
        %v1174 = vadd.f32 %v1109, %v1170
        %v1175 = vld [vmem:[%s8] sm:$0x1]
        %v1177 = vlaneseq
        %v1178 = vshrl.u32 %v1177, 7
        %v1179 = vsub.s32 0, %v1178
        %v1180 = vrot.slane %v1175, %v1179
        %v1182 = vadd.f32 %v1173, %v1180
        %v1183 = vadd.f32 %v1174, %v1180
        %v1184 = vmax.f32 %v1182, 0.0
        %v1185 = vmax.f32 %v1183, 0.0
        %v1186 = vpack.c.bf16 %v1185, %v1184
        %v1187 = vrot.slane %v1184, 4
        %v1188 = vrot.slane %v1185, 4
        %v1189 = vsel %vm972, %v1187, %v1188
        %v1190 = vsel %vm972, %v1188, %v1187
        %v1191 = vsel %vm979, %v1190, 0.0
        %v1192 = vsel %vm980, %v1189, 0.0
        %v1193 = vpack.c.bf16 %v1192, %v1191
        %v1194 = vld [vmem:[#allocation7] sm:$0xf]
        %v1195 = vld [vmem:[#allocation7 + $0x4] sm:$0xf]
        %v1196 = vld [vmem:[#allocation7 + $0x8] sm:$0xf]
        %v1197 = vld [vmem:[#allocation7 + $0xc] sm:$0xf]
        %v1198 = vrot.slane %v1184, 6
        %v1199 = vrot.slane %v1185, 6
        %v1200 = vsel %vm572, %v1198, %v1199
        %v1201 = vsel %vm572, %v1199, %v1198
        %v1202 = vsel %vm579, %v1201, 0.0
        %v1203 = vsel %vm580, %v1200, 0.0
        %v1204 = vpack.c.bf16 %v1203, %v1202
        %s1205 = scalar_lea.vmem [#allocation7], 16
        %v1206 = vld [vmem:[%s1205] sm:$0xf]
        %v1207 = vld [vmem:[%s1205 + $0x4] sm:$0xf]
        %v1208 = vld [vmem:[%s1205 + $0x8] sm:$0xf]
        %v1209 = vld [vmem:[%s1205 + $0xc] sm:$0xf]
        %v1214 = vunpack.c.l.b16 %v1206
        %v1215 = vunpack.c.l.b16 %v1207
        %v1216 = vunpack.c.l.b16 %v1208
        %v1217 = vunpack.c.l.b16 %v1209
        %v1218 = vpack.c.b16 %v1215, %v1214
        %v1219 = vpack.c.b16 %v1217, %v1216
        %v1223 = vsel %vm790, %v1204, 0
        %1225 = vmatprep.subr.bf16.mxu0 0
        %1226 = vmatpush1.bf16.msra.mxu0 %v1218
        %1227 = vmatprep.subr.bf16.mxu0 0
        %1228 = vmatpush1.bf16.msra.mxu0 %v1219
        %1229 = vmatprep.subr.bf16.mxu0 0
        %1230 = vmatpush1.bf16.msra.mxu0 0
        %1231 = vmatprep.subr.bf16.mxu0 0
        %1232 = vmatpush1.bf16.msra.mxu0 0
        %1233 = vmatprep.subr.bf16.mxu0 0
        %1234 = vmatpush1.bf16.msra.mxu0 0
        %1235 = vmatprep.subr.bf16.mxu0 0
        %1236 = vmatpush1.bf16.msra.mxu0 0
        %1237 = vmatprep.subr.bf16.mxu0 0
        %1238 = vmatpush1.bf16.msra.mxu0 0
        %1239 = vmatprep.subr.bf16.mxu0 0
        %1240 = vmatpush1.bf16.msra.mxu0 0
        %1241 = vmatprep.subr.bf16.mxu0 0
        %1242 = vmatpush1.bf16.msra.mxu0 0
        %1243 = vmatprep.subr.bf16.mxu0 0
        %1244 = vmatpush1.bf16.msra.mxu0 0
        %1245 = vmatprep.subr.bf16.mxu0 0
        %1246 = vmatpush1.bf16.msra.mxu0 0
        %1247 = vmatprep.subr.bf16.mxu0 0
        %1248 = vmatpush1.bf16.msra.mxu0 0
        %1249 = vmatprep.subr.bf16.mxu0 0
        %1250 = vmatpush1.bf16.msra.mxu0 0
        %1251 = vmatprep.subr.bf16.mxu0 0
        %1252 = vmatpush1.bf16.msra.mxu0 0
        %1253 = vmatprep.subr.bf16.mxu0 0
        %1254 = vmatpush1.bf16.msra.mxu0 0
        %1255 = vmatprep.subr.bf16.mxu0 0
        %1256 = vmatpush1.bf16.msra.mxu0 0
        %1257 = vmatprep.mubr.bf16.mxu0 0
        %1258 = vmatmul.mubr.bf16.gmra.mrb[0].mxu0 %v1223
        %v1259 = vpop.f32.mrb[0].mxu0
        %v1260 = vpop.f32.mrb[0].mxu0
        %v1261 = vpop.f32.mrb[0].mxu0
        %v1262 = vadd.f32 0.0, %v1261
        %v1263 = vpop.f32.mrb[0].mxu0
        %1264 = vdwg.mxu0
        %v1269 = vunpack.c.l.b16 %v1194
        %v1270 = vunpack.c.l.b16 %v1195
        %v1271 = vunpack.c.l.b16 %v1196
        %v1272 = vunpack.c.l.b16 %v1197
        %v1273 = vpack.c.b16 %v1270, %v1269
        %v1274 = vpack.c.b16 %v1272, %v1271
        %v1278 = vsel %vm790, %v1193, 0
        %1280 = vmatprep.subr.bf16.mxu0 0
        %1281 = vmatpush1.bf16.msra.mxu0 %v1273
        %1282 = vmatprep.subr.bf16.mxu0 0
        %1283 = vmatpush1.bf16.msra.mxu0 %v1274
        %1284 = vmatprep.subr.bf16.mxu0 0
        %1285 = vmatpush1.bf16.msra.mxu0 0
        %1286 = vmatprep.subr.bf16.mxu0 0
        %1287 = vmatpush1.bf16.msra.mxu0 0
        %1288 = vmatprep.subr.bf16.mxu0 0
        %1289 = vmatpush1.bf16.msra.mxu0 0
        %1290 = vmatprep.subr.bf16.mxu0 0
        %1291 = vmatpush1.bf16.msra.mxu0 0
        %1292 = vmatprep.subr.bf16.mxu0 0
        %1293 = vmatpush1.bf16.msra.mxu0 0
        %1294 = vmatprep.subr.bf16.mxu0 0
        %1295 = vmatpush1.bf16.msra.mxu0 0
        %1296 = vmatprep.subr.bf16.mxu0 0
        %1297 = vmatpush1.bf16.msra.mxu0 0
        %1298 = vmatprep.subr.bf16.mxu0 0
        %1299 = vmatpush1.bf16.msra.mxu0 0
        %1300 = vmatprep.subr.bf16.mxu0 0
        %1301 = vmatpush1.bf16.msra.mxu0 0
        %1302 = vmatprep.subr.bf16.mxu0 0
        %1303 = vmatpush1.bf16.msra.mxu0 0
        %1304 = vmatprep.subr.bf16.mxu0 0
        %1305 = vmatpush1.bf16.msra.mxu0 0
        %1306 = vmatprep.subr.bf16.mxu0 0
        %1307 = vmatpush1.bf16.msra.mxu0 0
        %1308 = vmatprep.subr.bf16.mxu0 0
        %1309 = vmatpush1.bf16.msra.mxu0 0
        %1310 = vmatprep.subr.bf16.mxu0 0
        %1311 = vmatpush1.bf16.msra.mxu0 0
        %1312 = vmatprep.mubr.bf16.mxu0 0
        %1313 = vmatmul.mubr.bf16.gmra.mrb[0].mxu0 %v1278
        %v1314 = vpop.f32.mrb[0].mxu0
        %v1315 = vpop.f32.mrb[0].mxu0
        %v1316 = vpop.f32.mrb[0].mxu0
        %v1317 = vadd.f32 %v1262, %v1316
        %v1318 = vpop.f32.mrb[0].mxu0
        %1319 = vdwg.mxu0
        %s1320 = scalar_lea.vmem [#allocation7], 32
        %v1321 = vld [vmem:[%s1320] sm:$0xf]
        %v1322 = vld [vmem:[%s1320 + $0x4] sm:$0xf]
        %v1323 = vld [vmem:[%s1320 + $0x8] sm:$0xf]
        %v1324 = vld [vmem:[%s1320 + $0xc] sm:$0xf]
        %v1329 = vunpack.c.l.b16 %v1321
        %v1330 = vunpack.c.l.b16 %v1322
        %v1331 = vunpack.c.l.b16 %v1323
        %v1332 = vunpack.c.l.b16 %v1324
        %v1333 = vpack.c.b16 %v1330, %v1329
        %v1334 = vpack.c.b16 %v1332, %v1331
        %v1338 = vsel %vm790, %v1186, 0
        %1340 = vmatprep.subr.bf16.mxu0 0
        %1341 = vmatpush1.bf16.msra.mxu0 %v1333
        %1342 = vmatprep.subr.bf16.mxu0 0
        %1343 = vmatpush1.bf16.msra.mxu0 %v1334
        %1344 = vmatprep.subr.bf16.mxu0 0
        %1345 = vmatpush1.bf16.msra.mxu0 0
        %1346 = vmatprep.subr.bf16.mxu0 0
        %1347 = vmatpush1.bf16.msra.mxu0 0
        %1348 = vmatprep.subr.bf16.mxu0 0
        %1349 = vmatpush1.bf16.msra.mxu0 0
        %1350 = vmatprep.subr.bf16.mxu0 0
        %1351 = vmatpush1.bf16.msra.mxu0 0
        %1352 = vmatprep.subr.bf16.mxu0 0
        %1353 = vmatpush1.bf16.msra.mxu0 0
        %1354 = vmatprep.subr.bf16.mxu0 0
        %1355 = vmatpush1.bf16.msra.mxu0 0
        %1356 = vmatprep.subr.bf16.mxu0 0
        %1357 = vmatpush1.bf16.msra.mxu0 0
        %1358 = vmatprep.subr.bf16.mxu0 0
        %1359 = vmatpush1.bf16.msra.mxu0 0
        %1360 = vmatprep.subr.bf16.mxu0 0
        %1361 = vmatpush1.bf16.msra.mxu0 0
        %1362 = vmatprep.subr.bf16.mxu0 0
        %1363 = vmatpush1.bf16.msra.mxu0 0
        %1364 = vmatprep.subr.bf16.mxu0 0
        %1365 = vmatpush1.bf16.msra.mxu0 0
        %1366 = vmatprep.subr.bf16.mxu0 0
        %1367 = vmatpush1.bf16.msra.mxu0 0
        %1368 = vmatprep.subr.bf16.mxu0 0
        %1369 = vmatpush1.bf16.msra.mxu0 0
        %1370 = vmatprep.subr.bf16.mxu0 0
        %1371 = vmatpush1.bf16.msra.mxu0 0
        %1372 = vmatprep.mubr.bf16.mxu0 0
        %1373 = vmatmul.mubr.bf16.gmra.mrb[0].mxu0 %v1338
        %v1374 = vpop.f32.mrb[0].mxu0
        %v1375 = vpop.f32.mrb[0].mxu0
        %v1376 = vpop.f32.mrb[0].mxu0
        %v1377 = vadd.f32 0.0, %v1376
        %v1378 = vpop.f32.mrb[0].mxu0
        %1379 = vdwg.mxu0
        %v1380 = vadd.f32 %v1317, %v1377
        %v1381 = vld [vmem:[%s10] sm:$0x1]
        %v1383 = vlaneseq
        %v1384 = vshrl.u32 %v1383, 7
        %v1385 = vsub.s32 0, %v1384
        %v1386 = vrot.slane %v1381, %v1385
        %v1388 = vadd.f32 %v1380, %v1386
        %v1389 = vmax.f32 %v1388, 0.0
        %v1390 = vadd.f32 %v1389, %v968
        %v1391 = vmax.f32 %v1390, 0.0
        %v1392 = vld [vmem:[%s12] sm:$0x1]
        %v1393 = vadd.f32 %v1392, 0.0
        %v1394 = vpack.c.bf16 %v1391, %v1391
        %v1395 = vld [vmem:[%s11] sm:$0xf]
        %v1396 = vld [vmem:[%s11 + $0x4] sm:$0xf]
        %v1397 = vld [vmem:[%s11 + $0x8] sm:$0xf]
        %v1398 = vld [vmem:[%s11 + $0xc] sm:$0xf]
        %v1400 = vshrl.u32 %v1394, 16
        %v1402 = vrot.slane %v1400, 3
        %v1407 = vunpack.c.l.b16 %v1395
        %v1408 = vunpack.c.l.b16 %v1396
        %v1409 = vunpack.c.l.b16 %v1397
        %v1410 = vunpack.c.l.b16 %v1398
        %v1411 = vpack.c.b16 %v1408, %v1407
        %v1412 = vpack.c.b16 %v1410, %v1409
        %v1416 = vsel %vm790, %v1402, 0
        %1418 = vmatprep.subr.bf16.mxu0 0
        %1419 = vmatpush1.bf16.msra.mxu0 %v1411
        %1420 = vmatprep.subr.bf16.mxu0 0
        %1421 = vmatpush1.bf16.msra.mxu0 %v1412
        %1422 = vmatprep.subr.bf16.mxu0 0
        %1423 = vmatpush1.bf16.msra.mxu0 0
        %1424 = vmatprep.subr.bf16.mxu0 0
        %1425 = vmatpush1.bf16.msra.mxu0 0
        %1426 = vmatprep.subr.bf16.mxu0 0
        %1427 = vmatpush1.bf16.msra.mxu0 0
        %1428 = vmatprep.subr.bf16.mxu0 0
        %1429 = vmatpush1.bf16.msra.mxu0 0
        %1430 = vmatprep.subr.bf16.mxu0 0
        %1431 = vmatpush1.bf16.msra.mxu0 0
        %1432 = vmatprep.subr.bf16.mxu0 0
        %1433 = vmatpush1.bf16.msra.mxu0 0
        %1434 = vmatprep.subr.bf16.mxu0 0
        %1435 = vmatpush1.bf16.msra.mxu0 0
        %1436 = vmatprep.subr.bf16.mxu0 0
        %1437 = vmatpush1.bf16.msra.mxu0 0
        %1438 = vmatprep.subr.bf16.mxu0 0
        %1439 = vmatpush1.bf16.msra.mxu0 0
        %1440 = vmatprep.subr.bf16.mxu0 0
        %1441 = vmatpush1.bf16.msra.mxu0 0
        %1442 = vmatprep.subr.bf16.mxu0 0
        %1443 = vmatpush1.bf16.msra.mxu0 0
        %1444 = vmatprep.subr.bf16.mxu0 0
        %1445 = vmatpush1.bf16.msra.mxu0 0
        %1446 = vmatprep.subr.bf16.mxu0 0
        %1447 = vmatpush1.bf16.msra.mxu0 0
        %1448 = vmatprep.subr.bf16.mxu0 0
        %1449 = vmatpush1.bf16.msra.mxu0 0
        %1450 = vmatprep.mubr.bf16.mxu0 0
        %1451 = vmatmul.mubr.bf16.gmra.mrb[0].mxu0 %v1416
        %v1452 = vpop.f32.mrb[0].mxu0
        %v1453 = vadd.f32 0.0, %v1452
        %v1454 = vpop.f32.mrb[0].mxu0
        %v1455 = vpop.f32.mrb[0].mxu0
        %v1456 = vpop.f32.mrb[0].mxu0
        %1457 = vdwg.mxu0
        %v1458 = vadd.f32 %v1393, %v1453
        %s1459 = scalar_lea.vmem %s11, 16
        %v1460 = vld [vmem:[%s1459] sm:$0xf]
        %v1461 = vld [vmem:[%s1459 + $0x4] sm:$0xf]
        %v1462 = vld [vmem:[%s1459 + $0x8] sm:$0xf]
        %v1463 = vld [vmem:[%s1459 + $0xc] sm:$0xf]
        %v1465 = vrot.slane %v1394, 3
        %v1470 = vunpack.c.l.b16 %v1460
        %v1471 = vunpack.c.l.b16 %v1461
        %v1472 = vunpack.c.l.b16 %v1462
        %v1473 = vunpack.c.l.b16 %v1463
        %v1474 = vpack.c.b16 %v1471, %v1470
        %v1475 = vpack.c.b16 %v1473, %v1472
        %v1479 = vsel %vm790, %v1465, 0
        %1481 = vmatprep.subr.bf16.mxu0 0
        %1482 = vmatpush1.bf16.msra.mxu0 %v1474
        %1483 = vmatprep.subr.bf16.mxu0 0
        %1484 = vmatpush1.bf16.msra.mxu0 %v1475
        %1485 = vmatprep.subr.bf16.mxu0 0
        %1486 = vmatpush1.bf16.msra.mxu0 0
        %1487 = vmatprep.subr.bf16.mxu0 0
        %1488 = vmatpush1.bf16.msra.mxu0 0
        %1489 = vmatprep.subr.bf16.mxu0 0
        %1490 = vmatpush1.bf16.msra.mxu0 0
        %1491 = vmatprep.subr.bf16.mxu0 0
        %1492 = vmatpush1.bf16.msra.mxu0 0
        %1493 = vmatprep.subr.bf16.mxu0 0
        %1494 = vmatpush1.bf16.msra.mxu0 0
        %1495 = vmatprep.subr.bf16.mxu0 0
        %1496 = vmatpush1.bf16.msra.mxu0 0
        %1497 = vmatprep.subr.bf16.mxu0 0
        %1498 = vmatpush1.bf16.msra.mxu0 0
        %1499 = vmatprep.subr.bf16.mxu0 0
        %1500 = vmatpush1.bf16.msra.mxu0 0
        %1501 = vmatprep.subr.bf16.mxu0 0
        %1502 = vmatpush1.bf16.msra.mxu0 0
        %1503 = vmatprep.subr.bf16.mxu0 0
        %1504 = vmatpush1.bf16.msra.mxu0 0
        %1505 = vmatprep.subr.bf16.mxu0 0
        %1506 = vmatpush1.bf16.msra.mxu0 0
        %1507 = vmatprep.subr.bf16.mxu0 0
        %1508 = vmatpush1.bf16.msra.mxu0 0
        %1509 = vmatprep.subr.bf16.mxu0 0
        %1510 = vmatpush1.bf16.msra.mxu0 0
        %1511 = vmatprep.subr.bf16.mxu0 0
        %1512 = vmatpush1.bf16.msra.mxu0 0
        %1513 = vmatprep.mubr.bf16.mxu0 0
        %1514 = vmatmul.mubr.bf16.gmra.mrb[0].mxu0 %v1479
        %v1515 = vpop.f32.mrb[0].mxu0
        %v1516 = vadd.f32 0.0, %v1515
        %v1517 = vpop.f32.mrb[0].mxu0
        %v1518 = vpop.f32.mrb[0].mxu0
        %v1519 = vpop.f32.mrb[0].mxu0
        %1520 = vdwg.mxu0
        %v1521 = vadd.f32 %v1458, %v1516
        %s1522 = scalar_lea.vmem %s11, 32
        %v1523 = vld [vmem:[%s1522] sm:$0xf]
        %v1524 = vld [vmem:[%s1522 + $0x4] sm:$0xf]
        %v1525 = vld [vmem:[%s1522 + $0x8] sm:$0xf]
        %v1526 = vld [vmem:[%s1522 + $0xc] sm:$0xf]
        %v1527 = vrot.slane %v1400, 2
        %v1532 = vunpack.c.l.b16 %v1523
        %v1533 = vunpack.c.l.b16 %v1524
        %v1534 = vunpack.c.l.b16 %v1525
        %v1535 = vunpack.c.l.b16 %v1526
        %v1536 = vpack.c.b16 %v1533, %v1532
        %v1537 = vpack.c.b16 %v1535, %v1534
        %v1541 = vsel %vm790, %v1527, 0
        %1543 = vmatprep.subr.bf16.mxu0 0
        %1544 = vmatpush1.bf16.msra.mxu0 %v1536
        %1545 = vmatprep.subr.bf16.mxu0 0
        %1546 = vmatpush1.bf16.msra.mxu0 %v1537
        %1547 = vmatprep.subr.bf16.mxu0 0
        %1548 = vmatpush1.bf16.msra.mxu0 0
        %1549 = vmatprep.subr.bf16.mxu0 0
        %1550 = vmatpush1.bf16.msra.mxu0 0
        %1551 = vmatprep.subr.bf16.mxu0 0
        %1552 = vmatpush1.bf16.msra.mxu0 0
        %1553 = vmatprep.subr.bf16.mxu0 0
        %1554 = vmatpush1.bf16.msra.mxu0 0
        %1555 = vmatprep.subr.bf16.mxu0 0
        %1556 = vmatpush1.bf16.msra.mxu0 0
        %1557 = vmatprep.subr.bf16.mxu0 0
        %1558 = vmatpush1.bf16.msra.mxu0 0
        %1559 = vmatprep.subr.bf16.mxu0 0
        %1560 = vmatpush1.bf16.msra.mxu0 0
        %1561 = vmatprep.subr.bf16.mxu0 0
        %1562 = vmatpush1.bf16.msra.mxu0 0
        %1563 = vmatprep.subr.bf16.mxu0 0
        %1564 = vmatpush1.bf16.msra.mxu0 0
        %1565 = vmatprep.subr.bf16.mxu0 0
        %1566 = vmatpush1.bf16.msra.mxu0 0
        %1567 = vmatprep.subr.bf16.mxu0 0
        %1568 = vmatpush1.bf16.msra.mxu0 0
        %1569 = vmatprep.subr.bf16.mxu0 0
        %1570 = vmatpush1.bf16.msra.mxu0 0
        %1571 = vmatprep.subr.bf16.mxu0 0
        %1572 = vmatpush1.bf16.msra.mxu0 0
        %1573 = vmatprep.subr.bf16.mxu0 0
        %1574 = vmatpush1.bf16.msra.mxu0 0
        %1575 = vmatprep.mubr.bf16.mxu0 0
        %1576 = vmatmul.mubr.bf16.gmra.mrb[0].mxu0 %v1541
        %v1577 = vpop.f32.mrb[0].mxu0
        %v1578 = vadd.f32 0.0, %v1577
        %v1579 = vpop.f32.mrb[0].mxu0
        %v1580 = vpop.f32.mrb[0].mxu0
        %v1581 = vpop.f32.mrb[0].mxu0
        %1582 = vdwg.mxu0
        %v1583 = vadd.f32 %v1521, %v1578
        %vm1584 = vcmask 57344
        %v1585 = vsel %vm1584, %v1583, -inf
        %1586 = vmax.xlane.f32.xlu0 %v1585
        %v1587 = vpop.xlane.xlu0 %1586
        %v1588 = vsub.f32 %v1583, %v1587
        %v1589 = vmul.f32 %v1588, 1.442695
        %v1590 = vpow.pop %v1589
        %v1591 = vsel %vm1584, %v1590, 0.0
        %1592 = vadd.xlane.f32.xlu0 %v1591
        %v1593 = vpop.xlane.xlu0 %1592
        %v1594 = vlog2.pop %v1593
        %v1595 = vmul.f32 %v1594, 0.6931472
        %v1596 = vadd.f32 %v1595, %v1587
        %v1597 = vsub.f32 %v1583, %v1596
        %1598 = vst.msk [vmem:[%s475] sm:$0x1] %vm1584, %v1597
        %s1599 = sand.u32 %s315, 1
        %s1600 = scalar_lea.sflag [#allocation4], %s1599
        %s1601 = sand.u32 %s315, 1
        %s1602 = scalar_lea.vmem [#allocation8], %s1601
        // Predicated region
        $region85: #{tpu_custom_call.1} parent=71 // pred_check
          %p1603 = pneg %p325
        $region86: #{tpu_custom_call.1} parent=71 // pred_check_branch
          %1605 = sbr.rel (%p1603) target = $region88
        $region87: #{tpu_custom_call.1} parent=71 // pred_region
          %s1607 = ssub.s32 16, 16
          %1608 = vsyncadd %s1600, %s1607
          %s1609 = smul.addr %s29, 16
          %s1610 = scalar_lea.hbm %s13, %s1609
          %s1612 = sshll.u32 %s1602, 4
          %s1613 = int_to_ptr.vmem [resolvable:$true] %s1612
          %1615 = dma.vmem_to_hbm [thread:$0]  %s1613, 16, %s1610, %s1600
        $region88: #{tpu_custom_call.1} parent=71 // pred_fallthru
          _
      $region72: #{tpu_custom_call.1} parent=5 // pred_fallthru
        _
      %p1616 = scmp.le.s32.totalorder 2, %s24
      // Predicated region
      $region89: #{tpu_custom_call.1} parent=5 // pred_check
        %p1617 = pneg %p1616
      $region90: #{tpu_custom_call.1} parent=5 // pred_check_branch
        %1619 = sbr.rel (%p1617) target = $region92
      $region91: #{tpu_custom_call.1} parent=5 // pred_region
        %s1620 = ssub.s32 %s24, 2
        // Predicated region
        $region93: #{tpu_custom_call.1} parent=91 // pred_check
          %p1621 = pneg %p331
        $region94: #{tpu_custom_call.1} parent=91 // pred_check_branch
          %1623 = sbr.rel (%p1621) target = $region96
        $region95: #{tpu_custom_call.1} parent=91 // pred_region
          %s1624 = sand.u32 %s316, 1
          %s1625 = scalar_lea.sflag [#allocation4], %s1624
          %s1626 = sand.u32 %s316, 1
          %s1627 = scalar_lea.vmem [#allocation8], %s1626
          %1628 = dma.done %s1625, 16
        $region96: #{tpu_custom_call.1} parent=91 // pred_fallthru
          _
      $region92: #{tpu_custom_call.1} parent=5 // pred_fallthru
        _
    $region6: #{tpu_custom_call.1} parent=1 // loop_footer
      %s28 = sadd.s32 1, %s24
    $region7: #{tpu_custom_call.1} parent=1 // loop_footer_branch
      %23 = sbr.rel target = $region3
    $region8: #{tpu_custom_call.1} parent=1 // loop_exit
      _
    %1629 = vsyncpa [#allocation3], 1
    %s1630 = scalar_lea.sflag [#allocation3], 1
    %1631 = vsyncpa %s1630, 1
    %1632 = vsyncpa [#allocation6], 1
    %1633 = vsyncpa [#allocation4], 1
    %s1634 = scalar_lea.sflag [#allocation4], 1
    %1635 = vsyncpa %s1634, 1

</llo_original>
